<compile_context>
chip_gen: v7x
topology: tpu7x:2x2x1
jax: 0.10.0
libtpu: 0.0.40
codegen_flags: <defaults>
</compile_context>

<pallas_src>
import jax
import jax.numpy as jnp
from jax.experimental import pallas as pl
from jax.experimental.pallas import tpu as pltpu

BN_EPS = 1e-5
LANE = 128


def _round_up(n, m):
    return ((n + m - 1) // m) * m


# --------------------------------------------------------------------------------------
# Kernel: fused  (x @ W1 + b1) -> ReLU -> (@ W2 + b2) -> ReLU -> (@ W3 + b3)
# (BN already folded into W1/b1, W2/b2; dropout = identity at inference.)
# --------------------------------------------------------------------------------------
def _mlp_kernel(x_ref, w1_ref, b1_ref, w2_ref, b2_ref, w3_ref, b3_ref, o_ref):
    # cast x to bf16 in-kernel (VPU); avoids a separate host-side pad+cast pass over x
    x = x_ref[...].astype(jnp.bfloat16)
    h = jnp.dot(x, w1_ref[...], preferred_element_type=jnp.float32) + b1_ref[...]
    h = jnp.maximum(h, 0.0)
    h = jnp.dot(h.astype(jnp.bfloat16), w2_ref[...],
                preferred_element_type=jnp.float32) + b2_ref[...]
    h = jnp.maximum(h, 0.0)
    o = jnp.dot(h.astype(jnp.bfloat16), w3_ref[...],
                preferred_element_type=jnp.float32) + b3_ref[...]
    o_ref[...] = o.astype(o_ref.dtype)          # bf16 lane-dense store (128 padded cols)


# --------------------------------------------------------------------------------------
# Host-side parameter preparation: fold BN, pad output columns, cast weights to bf16.
# --------------------------------------------------------------------------------------
def prepare_params(p):
    s1 = p["g1"] * jax.lax.rsqrt(p["v1"] + BN_EPS)           # (1, H1)
    w1 = p["w1"] * s1                                         # column-wise scale
    b1 = (p["b1"] - p["m1"]) * s1 + p["be1"]
    s2 = p["g2"] * jax.lax.rsqrt(p["v2"] + BN_EPS)            # (1, H2)
    w2 = p["w2"] * s2
    b2 = (p["b2"] - p["m2"]) * s2 + p["be2"]
    w3, b3 = p["w3"], p["b3"]

    in_size = w1.shape[0]
    out_size = w3.shape[1]
    n_pad = _round_up(out_size, LANE)                         # 7 -> 128 (lane-dense out)

    w3 = jnp.pad(w3, ((0, 0), (0, n_pad - out_size)))
    b3 = jnp.pad(b3, ((0, 0), (0, n_pad - out_size)))

    return dict(
        w1=w1.astype(jnp.bfloat16), b1=b1.astype(jnp.float32),
        w2=w2.astype(jnp.bfloat16), b2=b2.astype(jnp.float32),
        w3=w3.astype(jnp.bfloat16), b3=b3.astype(jnp.float32),
        in_size=in_size, out_size=out_size,
    )


# --------------------------------------------------------------------------------------
# Wrapper
# --------------------------------------------------------------------------------------
def classifier_forward(x, prep, *, batch_block=512):
    """x: (B, input_size) float32.  prep: output of prepare_params.  Returns bf16 logits."""
    B, K = x.shape
    assert K == prep["in_size"], (K, prep["in_size"])
    n_pad = prep["w3"].shape[1]
    out_size = prep["out_size"]

    args = (x, prep["w1"], prep["b1"], prep["w2"], prep["b2"], prep["w3"], prep["b3"])

    flops = 2 * B * (K * prep["w1"].shape[1]
                     + prep["w2"].shape[0] * prep["w2"].shape[1]
                     + prep["w3"].shape[0] * n_pad)
    bytes_accessed = sum(int(a.size) * a.dtype.itemsize for a in args) + B * n_pad * 2
    cost = pl.CostEstimate(flops=flops, transcendentals=0, bytes_accessed=bytes_accessed)
    out_shape = jax.ShapeDtypeStruct((B, n_pad), jnp.bfloat16)

    if B >= 256:
        # Streaming path: row-block grid, >= 2 blocks so v7x's two TensorCores both work.
        # Ragged B handled via pl.cdiv grid + partial last block (row-independent math,
        # so stale rows in the padded region never contaminate valid rows; their writes
        # are masked by the pipeline).
        blk = min(batch_block, _round_up(pl.cdiv(B, 2), 8))
        grid = (pl.cdiv(B, blk),)

        def full_spec(a):
            # constant index_map -> block never changes -> fetched once across the grid
            return pl.BlockSpec(a.shape, lambda i: (0,) * a.ndim)

        in_specs = [pl.BlockSpec((blk, K), lambda i: (i, 0))]     # last dim = full 1434
        in_specs += [full_spec(a) for a in args[1:]]
        out_specs = pl.BlockSpec((blk, n_pad), lambda i: (i, 0))

        out = pl.pallas_call(
            _mlp_kernel,
            out_shape=out_shape,
            grid=grid,
            in_specs=in_specs,
            out_specs=out_specs,
            compiler_params=pltpu.CompilerParams(
                dimension_semantics=("parallel",),
                vmem_limit_bytes=32 * 1024 * 1024,   # ~8 MiB live; explicit for v5e/v7x
            ),
            cost_estimate=cost,
        )(*args)
    else:
        # Small-batch path: total footprint ~1-2 MiB, keep everything VMEM-resident and
        # do the whole fused MLP in one grid-less invocation (per-grid-step overhead
        # would exceed the compute; latency dominated by the ~0.4 MiB weight read).
        vmem = pl.BlockSpec(memory_space=pltpu.MemorySpace.VMEM)
        out = pl.pallas_call(
            _mlp_kernel,
            out_shape=out_shape,
            in_specs=[vmem] * len(args),
            out_specs=vmem,
            cost_estimate=cost,
        )(*args)

    return out[:, :out_size]


# --------------------------------------------------------------------------------------
# Synthetic parameters matching the PyTorch module's shapes
# --------------------------------------------------------------------------------------
def init_params(key, input_size=1434, h1=256, h2=128, out_size=7):
    ks = jax.random.split(key, 16)

    def linear(kw, kb, fan_in, fan_out):
        bound = 1.0 / jnp.sqrt(fan_in)
        w = jax.random.uniform(kw, (fan_in, fan_out), jnp.float32, -bound, bound)  # (in, out)
        b = jax.random.uniform(kb, (1, fan_out), jnp.float32, -bound, bound)
        return w, b

    w1, b1 = linear(ks[0], ks[1], input_size, h1)
    w2, b2 = linear(ks[2], ks[3], h1, h2)
    w3, b3 = linear(ks[4], ks[5], h2, out_size)

    def bn(kg, kb, km, kv, n):
        g = jax.random.uniform(kg, (1, n), jnp.float32, 0.9, 1.1)       # gamma
        be = 0.05 * jax.random.normal(kb, (1, n), jnp.float32)          # beta
        m = 0.1 * jax.random.normal(km, (1, n), jnp.float32)            # running_mean
        v = jax.random.uniform(kv, (1, n), jnp.float32, 0.5, 1.5)       # running_var
        return g, be, m, v

    g1, be1, m1, v1 = bn(ks[6], ks[7], ks[8], ks[9], h1)
    g2, be2, m2, v2 = bn(ks[10], ks[11], ks[12], ks[13], h2)

    return dict(
        w1=w1, b1=b1, g1=g1, be1=be1, m1=m1, v1=v1,
        w2=w2, b2=b2, g2=g2, be2=be2, m2=m2, v2=v2,
        w3=w3, b3=b3,
    )


# --------------------------------------------------------------------------------------
# References
# --------------------------------------------------------------------------------------
def reference_forward_f32(x, p):
    """Pure-JAX f32 reference of the original (unfolded) module in eval mode."""
    h = x @ p["w1"] + p["b1"]
    h = (h - p["m1"]) * jax.lax.rsqrt(p["v1"] + BN_EPS) * p["g1"] + p["be1"]
    h = jnp.maximum(h, 0.0)
    h = h @ p["w2"] + p["b2"]
    h = (h - p["m2"]) * jax.lax.rsqrt(p["v2"] + BN_EPS) * p["g2"] + p["be2"]
    h = jnp.maximum(h, 0.0)
    return h @ p["w3"] + p["b3"]


def reference_forward_matched(x, prep):
    """Pure-JAX reference with the same folded/bf16 math as the kernel."""
    h = jnp.dot(x.astype(jnp.bfloat16), prep["w1"],
                preferred_element_type=jnp.float32) + prep["b1"]
    h = jnp.maximum(h, 0.0)
    h = jnp.dot(h.astype(jnp.bfloat16), prep["w2"],
                preferred_element_type=jnp.float32) + prep["b2"]
    h = jnp.maximum(h, 0.0)
    out = jnp.dot(h.astype(jnp.bfloat16), prep["w3"],
                  preferred_element_type=jnp.float32) + prep["b3"]
    return out.astype(jnp.bfloat16)[:, :prep["out_size"]]


if __name__ == "__main__":
    key = jax.random.PRNGKey(0)
    k_param, k_x, k_x2 = jax.random.split(key, 3)

    INPUT_SIZE, H1, H2, OUT = 1434, 256, 128, 7

    params = init_params(k_param, INPUT_SIZE, H1, H2, OUT)
    prep = prepare_params(params)

    # ---- small batch: grid-less, fully VMEM-resident path ----
    x_small = jax.random.normal(k_x, (8, INPUT_SIZE), jnp.float32)
    out_small = jax.block_until_ready(classifier_forward(x_small, prep))
    assert out_small.shape == (8, OUT), out_small.shape
    out_small_f32 = out_small.astype(jnp.float32)
    ref_m = reference_forward_matched(x_small, prep).astype(jnp.float32)
    assert jnp.allclose(out_small_f32, ref_m, atol=2e-2, rtol=2e-2), \
        float(jnp.max(jnp.abs(out_small_f32 - ref_m)))
    ref_f32 = reference_forward_f32(x_small, params)
    assert jnp.allclose(out_small_f32, ref_f32, atol=0.2, rtol=0.2), \
        float(jnp.max(jnp.abs(out_small_f32 - ref_f32)))

    # ---- larger ragged batch: streaming grid path (>=2 blocks, partial last block) ----
    x_big = jax.random.normal(k_x2, (1100, INPUT_SIZE), jnp.float32)
    out_big = jax.block_until_ready(classifier_forward(x_big, prep))
    assert out_big.shape == (1100, OUT), out_big.shape
    out_big_f32 = out_big.astype(jnp.float32)
    ref_big = reference_forward_matched(x_big, prep).astype(jnp.float32)
    assert jnp.allclose(out_big_f32, ref_big, atol=2e-2, rtol=2e-2), \
        float(jnp.max(jnp.abs(out_big_f32 - ref_big)))

    print("KERNEL_OK")
</pallas_src>

<mosaic_0001>
module attributes {stable_mosaic.version = 11 : i64} {
  func.func @_mlp_kernel(%arg0: memref<8x1434xf32, #tpu.memory_space<vmem>>, %arg1: memref<1434x256xbf16, #tpu.memory_space<vmem>>, %arg2: memref<1x256xf32, #tpu.memory_space<vmem>>, %arg3: memref<256x128xbf16, #tpu.memory_space<vmem>>, %arg4: memref<1x128xf32, #tpu.memory_space<vmem>>, %arg5: memref<128x128xbf16, #tpu.memory_space<vmem>>, %arg6: memref<1x128xf32, #tpu.memory_space<vmem>>, %arg7: memref<8x128xbf16, #tpu.memory_space<vmem>>) attributes {dimension_semantics = [], scalar_prefetch = 0 : i64, scratch_operands = 0 : i64, tpu.core_type = #tpu.core_type<tc>} {
    %c0 = arith.constant 0 : index
    %c0_0 = arith.constant 0 : index
    %0 = vector.load %arg0[%c0, %c0_0] : memref<8x1434xf32, #tpu.memory_space<vmem>>, vector<8x1434xf32>
    %1 = arith.truncf %0 : vector<8x1434xf32> to vector<8x1434xbf16>
    %c0_1 = arith.constant 0 : index
    %c0_2 = arith.constant 0 : index
    %2 = vector.load %arg1[%c0_1, %c0_2] : memref<1434x256xbf16, #tpu.memory_space<vmem>>, vector<1434x256xbf16>
    %cst = arith.constant dense<0.000000e+00> : vector<8x256xf32>
    %3 = tpu.matmul %1, %2, %cst {dimension_numbers = #tpu.dot_dimension_numbers<[1], [0], [0], [1], [0, 0, 1, 1], [], []>} : vector<8x1434xbf16>, vector<1434x256xbf16>, vector<8x256xf32> -> vector<8x256xf32>
    %c0_3 = arith.constant 0 : index
    %c0_4 = arith.constant 0 : index
    %4 = vector.load %arg2[%c0_3, %c0_4] : memref<1x256xf32, #tpu.memory_space<vmem>>, vector<1x256xf32>
    %5 = vector.broadcast %4 : vector<1x256xf32> to vector<8x256xf32>
    %6 = arith.addf %3, %5 : vector<8x256xf32>
    %cst_5 = arith.constant 0.000000e+00 : f32
    %7 = vector.broadcast %cst_5 : f32 to vector<8x256xf32>
    %8 = arith.maximumf %6, %7 : vector<8x256xf32>
    %9 = arith.truncf %8 : vector<8x256xf32> to vector<8x256xbf16>
    %c0_6 = arith.constant 0 : index
    %c0_7 = arith.constant 0 : index
    %10 = vector.load %arg3[%c0_6, %c0_7] : memref<256x128xbf16, #tpu.memory_space<vmem>>, vector<256x128xbf16>
    %cst_8 = arith.constant dense<0.000000e+00> : vector<8x128xf32>
    %11 = tpu.matmul %9, %10, %cst_8 {dimension_numbers = #tpu.dot_dimension_numbers<[1], [0], [0], [1], [0, 0, 1, 1], [], []>} : vector<8x256xbf16>, vector<256x128xbf16>, vector<8x128xf32> -> vector<8x128xf32>
    %c0_9 = arith.constant 0 : index
    %c0_10 = arith.constant 0 : index
    %12 = vector.load %arg4[%c0_9, %c0_10] : memref<1x128xf32, #tpu.memory_space<vmem>>, vector<1x128xf32>
    %13 = vector.broadcast %12 : vector<1x128xf32> to vector<8x128xf32>
    %14 = arith.addf %11, %13 : vector<8x128xf32>
    %cst_11 = arith.constant 0.000000e+00 : f32
    %15 = vector.broadcast %cst_11 : f32 to vector<8x128xf32>
    %16 = arith.maximumf %14, %15 : vector<8x128xf32>
    %17 = arith.truncf %16 : vector<8x128xf32> to vector<8x128xbf16>
    %c0_12 = arith.constant 0 : index
    %c0_13 = arith.constant 0 : index
    %18 = vector.load %arg5[%c0_12, %c0_13] : memref<128x128xbf16, #tpu.memory_space<vmem>>, vector<128x128xbf16>
    %cst_14 = arith.constant dense<0.000000e+00> : vector<8x128xf32>
    %19 = tpu.matmul %17, %18, %cst_14 {dimension_numbers = #tpu.dot_dimension_numbers<[1], [0], [0], [1], [0, 0, 1, 1], [], []>} : vector<8x128xbf16>, vector<128x128xbf16>, vector<8x128xf32> -> vector<8x128xf32>
    %c0_15 = arith.constant 0 : index
    %c0_16 = arith.constant 0 : index
    %20 = vector.load %arg6[%c0_15, %c0_16] : memref<1x128xf32, #tpu.memory_space<vmem>>, vector<1x128xf32>
    %21 = vector.broadcast %20 : vector<1x128xf32> to vector<8x128xf32>
    %22 = arith.addf %19, %21 : vector<8x128xf32>
    %23 = arith.truncf %22 : vector<8x128xf32> to vector<8x128xbf16>
    %c0_17 = arith.constant 0 : index
    %c0_18 = arith.constant 0 : index
    %24 = vector.load %arg7[%c0_17, %c0_18] : memref<8x128xbf16, #tpu.memory_space<vmem>>, vector<8x128xbf16>
    tpu.vector_store %arg7[%c0_17, %c0_18], %23 {strides = array<i32>} : memref<8x128xbf16, #tpu.memory_space<vmem>>, vector<8x128xbf16>,
    return
  }
}

</mosaic_0001>

<llo_original>
// kernel: tpu_custom_call.1
$region0: #{tpu_custom_call.1}
  #allocation0 [shape = 'u32[]', space=smem, size = 0x4, offset = 0x4, fixed_abs, tag = 'smem constant byte address 0x4 - core index']
  #allocation1 [shape = 'u32[144,128]{1,0:T(1,128)}', space=vmem, size = 0x12000, scoped, tag = 'internal scratch']
  %s0 = inlined_call_operand.hbm [shape: f32[8,1434], index: 0, kind: input, shape index: {}]
  %s1 = inlined_call_operand.hbm [shape: bf16[1434,256], index: 1, kind: input, shape index: {}]
  %s2 = inlined_call_operand.vmem [shape: f32[1,256], index: 2, kind: input, shape index: {}]
  %s3 = inlined_call_operand.hbm [shape: bf16[256,128], index: 3, kind: input, shape index: {}]
  %s4 = inlined_call_operand.vmem [shape: f32[1,128], index: 4, kind: input, shape index: {}]
  %s5 = inlined_call_operand.hbm [shape: bf16[128,128], index: 5, kind: input, shape index: {}]
  %s6 = inlined_call_operand.vmem [shape: f32[1,128], index: 6, kind: input, shape index: {}]
  %s7 = inlined_call_operand.hbm [shape: bf16[8,128], index: 7, kind: output, shape index: {}]
  %s8 = sld [smem:[#allocation0]]
  $region54: #{tpu_custom_call.1} parent=0
    _
  %s10 = ssub.s32 1, %s8
  %s11 = scalar_select 0, %s10, %s8
  $region1: #{tpu_custom_call.1} parent=0
    #allocation2 [shape = 'u8[49152]{0}', space=vmem, size = 0xc000, scoped, tag = 'input window, operand 0, single buffered']
    #allocation3 [shape = 's32[1]{0}', space=sflag, size = 0x4, scoped, tag = 'scoped memory for tpu_custom_call.1']
    #allocation4 [shape = 's32[1]{0}', space=sflag, size = 0x4, scoped, tag = 'scoped memory for tpu_custom_call.1']
    #allocation5 [shape = 'u8[737280]{0}', space=vmem, size = 0xb4000, scoped, tag = 'input window, operand 1, single buffered']
    #allocation6 [shape = 's32[1]{0}', space=sflag, size = 0x4, scoped, tag = 'scoped memory for tpu_custom_call.1']
    #allocation7 [shape = 'u8[65536]{0}', space=vmem, size = 0x10000, scoped, tag = 'input window, operand 3, single buffered']
    #allocation8 [shape = 'u8[32768]{0}', space=vmem, size = 0x8000, scoped, tag = 'input window, operand 5, single buffered']
    #allocation9 [shape = 's32[1]{0}', space=sflag, size = 0x4, scoped, tag = 'scoped memory for tpu_custom_call.1']
    #allocation10 [shape = 'u8[2048]{0}', space=vmem, size = 0x800, scoped, tag = 'output window, operand 0, single buffered']
    %12 = vsyncpa [#allocation3], 0
    %13 = vsyncpa [#allocation6], 0
    %14 = vsyncpa [#allocation9], 0
    %15 = vsyncpa [#allocation4], 0
    // Predicated region
    $region2: #{tpu_custom_call.1} parent=1 // pred_check
      _
    $region3: #{tpu_custom_call.1} parent=1 // pred_check_branch
      %17 = sbr.rel (0) target = $region5
    $region4: #{tpu_custom_call.1} parent=1 // pred_region
      %s19 = ssub.s32 1536, 1536
      %20 = vsyncadd [#allocation3], %s19
      %s22 = sshll.u32 [#allocation2], 4
      %s23 = int_to_ptr.vmem [resolvable:$true] %s22
      %25 = dma.hbm_to_vmem [thread:$0]  %s0, 1536, %s23, [#allocation3]
    $region5: #{tpu_custom_call.1} parent=1 // pred_fallthru
      _
    // Predicated region
    $region6: #{tpu_custom_call.1} parent=1 // pred_check
      _
    $region7: #{tpu_custom_call.1} parent=1 // pred_check_branch
      %27 = sbr.rel (0) target = $region9
    $region8: #{tpu_custom_call.1} parent=1 // pred_region
      %s29 = ssub.s32 23040, 23040
      %30 = vsyncadd [#allocation6], %s29
      %s31 = sshll.u32 [#allocation5], 4
      %s32 = int_to_ptr.vmem [resolvable:$true] %s31
      %37 = dma.hbm_to_vmem [thread:$0]  %s1, 23040, %s32, [#allocation6], 128, 128, 8
    $region9: #{tpu_custom_call.1} parent=1 // pred_fallthru
      _
    // Predicated region
    $region10: #{tpu_custom_call.1} parent=1 // pred_check
      _
    $region11: #{tpu_custom_call.1} parent=1 // pred_check_branch
      %39 = sbr.rel (0) target = $region13
    $region12: #{tpu_custom_call.1} parent=1 // pred_region
      _
    $region13: #{tpu_custom_call.1} parent=1 // pred_fallthru
      _
    // Predicated region
    $region14: #{tpu_custom_call.1} parent=1 // pred_check
      _
    $region15: #{tpu_custom_call.1} parent=1 // pred_check_branch
      %41 = sbr.rel (0) target = $region17
    $region16: #{tpu_custom_call.1} parent=1 // pred_region
      %s43 = ssub.s32 2048, 2048
      %44 = vsyncadd [#allocation6], %s43
      %s45 = sshll.u32 [#allocation7], 4
      %s46 = int_to_ptr.vmem [resolvable:$true] %s45
      %51 = dma.hbm_to_vmem [thread:$0]  %s3, 2048, %s46, [#allocation6], 64, 64, 4
    $region17: #{tpu_custom_call.1} parent=1 // pred_fallthru
      _
    // Predicated region
    $region18: #{tpu_custom_call.1} parent=1 // pred_check
      _
    $region19: #{tpu_custom_call.1} parent=1 // pred_check_branch
      %53 = sbr.rel (0) target = $region21
    $region20: #{tpu_custom_call.1} parent=1 // pred_region
      _
    $region21: #{tpu_custom_call.1} parent=1 // pred_fallthru
      _
    // Predicated region
    $region22: #{tpu_custom_call.1} parent=1 // pred_check
      _
    $region23: #{tpu_custom_call.1} parent=1 // pred_check_branch
      %55 = sbr.rel (0) target = $region25
    $region24: #{tpu_custom_call.1} parent=1 // pred_region
      %s57 = ssub.s32 1024, 1024
      %58 = vsyncadd [#allocation9], %s57
      %s59 = sshll.u32 [#allocation8], 4
      %s60 = int_to_ptr.vmem [resolvable:$true] %s59
      %65 = dma.hbm_to_vmem [thread:$0]  %s5, 1024, %s60, [#allocation9], 64, 64, 4
    $region25: #{tpu_custom_call.1} parent=1 // pred_fallthru
      _
    // Predicated region
    $region26: #{tpu_custom_call.1} parent=1 // pred_check
      _
    $region27: #{tpu_custom_call.1} parent=1 // pred_check_branch
      %67 = sbr.rel (0) target = $region29
    $region28: #{tpu_custom_call.1} parent=1 // pred_region
      _
    $region29: #{tpu_custom_call.1} parent=1 // pred_fallthru
      _
    // Predicated region
    $region30: #{tpu_custom_call.1} parent=1 // pred_check
      _
    $region31: #{tpu_custom_call.1} parent=1 // pred_check_branch
      %69 = sbr.rel (0) target = $region33
    $region32: #{tpu_custom_call.1} parent=1 // pred_region
      %70 = dma.done [#allocation3], 1536
    $region33: #{tpu_custom_call.1} parent=1 // pred_fallthru
      _
    // Predicated region
    $region34: #{tpu_custom_call.1} parent=1 // pred_check
      _
    $region35: #{tpu_custom_call.1} parent=1 // pred_check_branch
      %72 = sbr.rel (0) target = $region37
    $region36: #{tpu_custom_call.1} parent=1 // pred_region
      %73 = dma.done [#allocation6], 23040
    $region37: #{tpu_custom_call.1} parent=1 // pred_fallthru
      _
    // Predicated region
    $region38: #{tpu_custom_call.1} parent=1 // pred_check
      _
    $region39: #{tpu_custom_call.1} parent=1 // pred_check_branch
      %75 = sbr.rel (0) target = $region41
    $region40: #{tpu_custom_call.1} parent=1 // pred_region
      %76 = dma.done [#allocation6], 2048
    $region41: #{tpu_custom_call.1} parent=1 // pred_fallthru
      _
    // Predicated region
    $region42: #{tpu_custom_call.1} parent=1 // pred_check
      _
    $region43: #{tpu_custom_call.1} parent=1 // pred_check_branch
      %78 = sbr.rel (0) target = $region45
    $region44: #{tpu_custom_call.1} parent=1 // pred_region
      %79 = dma.done [#allocation9], 1024
    $region45: #{tpu_custom_call.1} parent=1 // pred_fallthru
      _
    %v81 = vld [vmem:[#allocation2] sm:$0xff]
    %v82 = vld [vmem:[#allocation2 + $0x8] sm:$0xff]
    %v83 = vld [vmem:[#allocation2 + $0x10] sm:$0xff]
    %v84 = vld [vmem:[#allocation2 + $0x18] sm:$0xff]
    %v85 = vld [vmem:[#allocation2 + $0x20] sm:$0xff]
    %v86 = vld [vmem:[#allocation2 + $0x28] sm:$0xff]
    %v87 = vld [vmem:[#allocation2 + $0x30] sm:$0xff]
    %v88 = vld [vmem:[#allocation2 + $0x38] sm:$0xff]
    %v89 = vld [vmem:[#allocation2 + $0x40] sm:$0xff]
    %v90 = vld [vmem:[#allocation2 + $0x48] sm:$0xff]
    %v91 = vld [vmem:[#allocation2 + $0x50] sm:$0xff]
    %v92 = vld [vmem:[#allocation2 + $0x58] sm:$0xff]
    %v93 = vpack.c.bf16 %v81, %v81
    %v94 = vpack.c.bf16 %v82, %v82
    %v95 = vpack.c.bf16 %v83, %v83
    %v96 = vpack.c.bf16 %v84, %v84
    %v97 = vpack.c.bf16 %v85, %v85
    %v98 = vpack.c.bf16 %v86, %v86
    %v99 = vpack.c.bf16 %v87, %v87
    %v100 = vpack.c.bf16 %v88, %v88
    %v101 = vpack.c.bf16 %v89, %v89
    %v102 = vpack.c.bf16 %v90, %v90
    %v103 = vpack.c.bf16 %v91, %v91
    %v104 = vpack.c.bf16 %v92, %v92
    %v105 = vld [vmem:[#allocation5] sm:$0xff]
    %v106 = vld [vmem:[#allocation5 + $0x8] sm:$0xff]
    %v107 = vld [vmem:[#allocation5 + $0x10] sm:$0xff]
    %v108 = vld [vmem:[#allocation5 + $0x18] sm:$0xff]
    %v109 = vld [vmem:[#allocation5 + $0x20] sm:$0xff]
    %v110 = vld [vmem:[#allocation5 + $0x28] sm:$0xff]
    %v111 = vld [vmem:[#allocation5 + $0x30] sm:$0xff]
    %v112 = vld [vmem:[#allocation5 + $0x38] sm:$0xff]
    %v113 = vld [vmem:[#allocation5 + $0x40] sm:$0xff]
    %v114 = vld [vmem:[#allocation5 + $0x48] sm:$0xff]
    %v115 = vld [vmem:[#allocation5 + $0x50] sm:$0xff]
    %v116 = vld [vmem:[#allocation5 + $0x58] sm:$0xff]
    %v117 = vld [vmem:[#allocation5 + $0x60] sm:$0xff]
    %v118 = vld [vmem:[#allocation5 + $0x68] sm:$0xff]
    %v119 = vld [vmem:[#allocation5 + $0x70] sm:$0xff]
    %v120 = vld [vmem:[#allocation5 + $0x78] sm:$0xff]
    %v121 = vld [vmem:[#allocation5 + $0x80] sm:$0xff]
    %v122 = vld [vmem:[#allocation5 + $0x88] sm:$0xff]
    %v123 = vld [vmem:[#allocation5 + $0x90] sm:$0xff]
    %v124 = vld [vmem:[#allocation5 + $0x98] sm:$0xff]
    %v125 = vld [vmem:[#allocation5 + $0xa0] sm:$0xff]
    %v126 = vld [vmem:[#allocation5 + $0xa8] sm:$0xff]
    %v127 = vld [vmem:[#allocation5 + $0xb0] sm:$0xff]
    %v128 = vld [vmem:[#allocation5 + $0xb8] sm:$0xff]
    %v129 = vld [vmem:[#allocation5 + $0xc0] sm:$0xff]
    %v130 = vld [vmem:[#allocation5 + $0xc8] sm:$0xff]
    %v131 = vld [vmem:[#allocation5 + $0xd0] sm:$0xff]
    %v132 = vld [vmem:[#allocation5 + $0xd8] sm:$0xff]
    %v133 = vld [vmem:[#allocation5 + $0xe0] sm:$0xff]
    %v134 = vld [vmem:[#allocation5 + $0xe8] sm:$0xff]
    %v135 = vld [vmem:[#allocation5 + $0xf0] sm:$0xff]
    %v136 = vld [vmem:[#allocation5 + $0xf8] sm:$0xff]
    %v137 = vld [vmem:[#allocation5 + $0x100] sm:$0xff]
    %v138 = vld [vmem:[#allocation5 + $0x108] sm:$0xff]
    %v139 = vld [vmem:[#allocation5 + $0x110] sm:$0xff]
    %v140 = vld [vmem:[#allocation5 + $0x118] sm:$0xff]
    %v141 = vld [vmem:[#allocation5 + $0x120] sm:$0xff]
    %v142 = vld [vmem:[#allocation5 + $0x128] sm:$0xff]
    %v143 = vld [vmem:[#allocation5 + $0x130] sm:$0xff]
    %v144 = vld [vmem:[#allocation5 + $0x138] sm:$0xff]
    %v145 = vld [vmem:[#allocation5 + $0x140] sm:$0xff]
    %v146 = vld [vmem:[#allocation5 + $0x148] sm:$0xff]
    %v147 = vld [vmem:[#allocation5 + $0x150] sm:$0xff]
    %v148 = vld [vmem:[#allocation5 + $0x158] sm:$0xff]
    %v149 = vld [vmem:[#allocation5 + $0x160] sm:$0xff]
    %v150 = vld [vmem:[#allocation5 + $0x168] sm:$0xff]
    %v151 = vld [vmem:[#allocation5 + $0x170] sm:$0xff]
    %v152 = vld [vmem:[#allocation5 + $0x178] sm:$0xff]
    %v153 = vld [vmem:[#allocation5 + $0x180] sm:$0xff]
    %v154 = vld [vmem:[#allocation5 + $0x188] sm:$0xff]
    %v155 = vld [vmem:[#allocation5 + $0x190] sm:$0xff]
    %v156 = vld [vmem:[#allocation5 + $0x198] sm:$0xff]
    %v157 = vld [vmem:[#allocation5 + $0x1a0] sm:$0xff]
    %v158 = vld [vmem:[#allocation5 + $0x1a8] sm:$0xff]
    %v159 = vld [vmem:[#allocation5 + $0x1b0] sm:$0xff]
    %v160 = vld [vmem:[#allocation5 + $0x1b8] sm:$0xff]
    %v161 = vld [vmem:[#allocation5 + $0x1c0] sm:$0xff]
    %v162 = vld [vmem:[#allocation5 + $0x1c8] sm:$0xff]
    %v163 = vld [vmem:[#allocation5 + $0x1d0] sm:$0xff]
    %v164 = vld [vmem:[#allocation5 + $0x1d8] sm:$0xff]
    %v165 = vld [vmem:[#allocation5 + $0x1e0] sm:$0xff]
    %v166 = vld [vmem:[#allocation5 + $0x1e8] sm:$0xff]
    %v167 = vld [vmem:[#allocation5 + $0x1f0] sm:$0xff]
    %v168 = vld [vmem:[#allocation5 + $0x1f8] sm:$0xff]
    %v169 = vld [vmem:[#allocation5 + $0x200] sm:$0xff]
    %v170 = vld [vmem:[#allocation5 + $0x208] sm:$0xff]
    %v171 = vld [vmem:[#allocation5 + $0x210] sm:$0xff]
    %v172 = vld [vmem:[#allocation5 + $0x218] sm:$0xff]
    %v173 = vld [vmem:[#allocation5 + $0x220] sm:$0xff]
    %v174 = vld [vmem:[#allocation5 + $0x228] sm:$0xff]
    %v175 = vld [vmem:[#allocation5 + $0x230] sm:$0xff]
    %v176 = vld [vmem:[#allocation5 + $0x238] sm:$0xff]
    %v177 = vld [vmem:[#allocation5 + $0x240] sm:$0xff]
    %v178 = vld [vmem:[#allocation5 + $0x248] sm:$0xff]
    %v179 = vld [vmem:[#allocation5 + $0x250] sm:$0xff]
    %v180 = vld [vmem:[#allocation5 + $0x258] sm:$0xff]
    %v181 = vld [vmem:[#allocation5 + $0x260] sm:$0xff]
    %v182 = vld [vmem:[#allocation5 + $0x268] sm:$0xff]
    %v183 = vld [vmem:[#allocation5 + $0x270] sm:$0xff]
    %v184 = vld [vmem:[#allocation5 + $0x278] sm:$0xff]
    %v185 = vld [vmem:[#allocation5 + $0x280] sm:$0xff]
    %v186 = vld [vmem:[#allocation5 + $0x288] sm:$0xff]
    %v187 = vld [vmem:[#allocation5 + $0x290] sm:$0xff]
    %v188 = vld [vmem:[#allocation5 + $0x298] sm:$0xff]
    %v189 = vld [vmem:[#allocation5 + $0x2a0] sm:$0xff]
    %v190 = vld [vmem:[#allocation5 + $0x2a8] sm:$0xff]
    %v191 = vld [vmem:[#allocation5 + $0x2b0] sm:$0xff]
    %v192 = vld [vmem:[#allocation5 + $0x2b8] sm:$0xff]
    %v193 = vld [vmem:[#allocation5 + $0x2c0] sm:$0xff]
    %v194 = vld [vmem:[#allocation5 + $0x2c8] sm:$0xff]
    %v195 = vld [vmem:[#allocation5 + $0x2d0] sm:$0xff]
    %v196 = vld [vmem:[#allocation5 + $0x2d8] sm:$0xff]
    %v197 = vld [vmem:[#allocation5 + $0x2e0] sm:$0xff]
    %v198 = vld [vmem:[#allocation5 + $0x2e8] sm:$0xff]
    %v199 = vld [vmem:[#allocation5 + $0x2f0] sm:$0xff]
    %v200 = vld [vmem:[#allocation5 + $0x2f8] sm:$0xff]
    %v201 = vld [vmem:[#allocation5 + $0x300] sm:$0xff]
    %v202 = vld [vmem:[#allocation5 + $0x308] sm:$0xff]
    %v203 = vld [vmem:[#allocation5 + $0x310] sm:$0xff]
    %v204 = vld [vmem:[#allocation5 + $0x318] sm:$0xff]
    %v205 = vld [vmem:[#allocation5 + $0x320] sm:$0xff]
    %v206 = vld [vmem:[#allocation5 + $0x328] sm:$0xff]
    %v207 = vld [vmem:[#allocation5 + $0x330] sm:$0xff]
    %v208 = vld [vmem:[#allocation5 + $0x338] sm:$0xff]
    %v209 = vld [vmem:[#allocation5 + $0x340] sm:$0xff]
    %v210 = vld [vmem:[#allocation5 + $0x348] sm:$0xff]
    %v211 = vld [vmem:[#allocation5 + $0x350] sm:$0xff]
    %v212 = vld [vmem:[#allocation5 + $0x358] sm:$0xff]
    %v213 = vld [vmem:[#allocation5 + $0x360] sm:$0xff]
    %v214 = vld [vmem:[#allocation5 + $0x368] sm:$0xff]
    %v215 = vld [vmem:[#allocation5 + $0x370] sm:$0xff]
    %v216 = vld [vmem:[#allocation5 + $0x378] sm:$0xff]
    %v217 = vld [vmem:[#allocation5 + $0x380] sm:$0xff]
    %v218 = vld [vmem:[#allocation5 + $0x388] sm:$0xff]
    %v219 = vld [vmem:[#allocation5 + $0x390] sm:$0xff]
    %v220 = vld [vmem:[#allocation5 + $0x398] sm:$0xff]
    %v221 = vld [vmem:[#allocation5 + $0x3a0] sm:$0xff]
    %v222 = vld [vmem:[#allocation5 + $0x3a8] sm:$0xff]
    %v223 = vld [vmem:[#allocation5 + $0x3b0] sm:$0xff]
    %v224 = vld [vmem:[#allocation5 + $0x3b8] sm:$0xff]
    %v225 = vld [vmem:[#allocation5 + $0x3c0] sm:$0xff]
    %v226 = vld [vmem:[#allocation5 + $0x3c8] sm:$0xff]
    %v227 = vld [vmem:[#allocation5 + $0x3d0] sm:$0xff]
    %v228 = vld [vmem:[#allocation5 + $0x3d8] sm:$0xff]
    %v229 = vld [vmem:[#allocation5 + $0x3e0] sm:$0xff]
    %v230 = vld [vmem:[#allocation5 + $0x3e8] sm:$0xff]
    %v231 = vld [vmem:[#allocation5 + $0x3f0] sm:$0xff]
    %v232 = vld [vmem:[#allocation5 + $0x3f8] sm:$0xff]
    %v233 = vld [vmem:[#allocation5 + $0x400] sm:$0xff]
    %v234 = vld [vmem:[#allocation5 + $0x408] sm:$0xff]
    %v235 = vld [vmem:[#allocation5 + $0x410] sm:$0xff]
    %v236 = vld [vmem:[#allocation5 + $0x418] sm:$0xff]
    %v237 = vld [vmem:[#allocation5 + $0x420] sm:$0xff]
    %v238 = vld [vmem:[#allocation5 + $0x428] sm:$0xff]
    %v239 = vld [vmem:[#allocation5 + $0x430] sm:$0xff]
    %v240 = vld [vmem:[#allocation5 + $0x438] sm:$0xff]
    %v241 = vld [vmem:[#allocation5 + $0x440] sm:$0xff]
    %v242 = vld [vmem:[#allocation5 + $0x448] sm:$0xff]
    %v243 = vld [vmem:[#allocation5 + $0x450] sm:$0xff]
    %v244 = vld [vmem:[#allocation5 + $0x458] sm:$0xff]
    %v245 = vld [vmem:[#allocation5 + $0x460] sm:$0xff]
    %v246 = vld [vmem:[#allocation5 + $0x468] sm:$0xff]
    %v247 = vld [vmem:[#allocation5 + $0x470] sm:$0xff]
    %v248 = vld [vmem:[#allocation5 + $0x478] sm:$0xff]
    %v249 = vld [vmem:[#allocation5 + $0x480] sm:$0xff]
    %v250 = vld [vmem:[#allocation5 + $0x488] sm:$0xff]
    %v251 = vld [vmem:[#allocation5 + $0x490] sm:$0xff]
    %v252 = vld [vmem:[#allocation5 + $0x498] sm:$0xff]
    %v253 = vld [vmem:[#allocation5 + $0x4a0] sm:$0xff]
    %v254 = vld [vmem:[#allocation5 + $0x4a8] sm:$0xff]
    %v255 = vld [vmem:[#allocation5 + $0x4b0] sm:$0xff]
    %v256 = vld [vmem:[#allocation5 + $0x4b8] sm:$0xff]
    %v257 = vld [vmem:[#allocation5 + $0x4c0] sm:$0xff]
    %v258 = vld [vmem:[#allocation5 + $0x4c8] sm:$0xff]
    %v259 = vld [vmem:[#allocation5 + $0x4d0] sm:$0xff]
    %v260 = vld [vmem:[#allocation5 + $0x4d8] sm:$0xff]
    %v261 = vld [vmem:[#allocation5 + $0x4e0] sm:$0xff]
    %v262 = vld [vmem:[#allocation5 + $0x4e8] sm:$0xff]
    %v263 = vld [vmem:[#allocation5 + $0x4f0] sm:$0xff]
    %v264 = vld [vmem:[#allocation5 + $0x4f8] sm:$0xff]
    %v265 = vld [vmem:[#allocation5 + $0x500] sm:$0xff]
    %v266 = vld [vmem:[#allocation5 + $0x508] sm:$0xff]
    %v267 = vld [vmem:[#allocation5 + $0x510] sm:$0xff]
    %v268 = vld [vmem:[#allocation5 + $0x518] sm:$0xff]
    %v269 = vld [vmem:[#allocation5 + $0x520] sm:$0xff]
    %v270 = vld [vmem:[#allocation5 + $0x528] sm:$0xff]
    %v271 = vld [vmem:[#allocation5 + $0x530] sm:$0xff]
    %v272 = vld [vmem:[#allocation5 + $0x538] sm:$0xff]
    %v273 = vld [vmem:[#allocation5 + $0x540] sm:$0xff]
    %v274 = vld [vmem:[#allocation5 + $0x548] sm:$0xff]
    %v275 = vld [vmem:[#allocation5 + $0x550] sm:$0xff]
    %v276 = vld [vmem:[#allocation5 + $0x558] sm:$0xff]
    %v277 = vld [vmem:[#allocation5 + $0x560] sm:$0xff]
    %v278 = vld [vmem:[#allocation5 + $0x568] sm:$0xff]
    %v279 = vld [vmem:[#allocation5 + $0x570] sm:$0xff]
    %v280 = vld [vmem:[#allocation5 + $0x578] sm:$0xff]
    %v281 = vld [vmem:[#allocation5 + $0x580] sm:$0xff]
    %v282 = vld [vmem:[#allocation5 + $0x588] sm:$0xff]
    %v283 = vld [vmem:[#allocation5 + $0x590] sm:$0xff]
    %v284 = vld [vmem:[#allocation5 + $0x598] sm:$0x11]
    %v285 = vld [vmem:[%s2] sm:$0x3]
    %v287 = vlaneseq
    %v288 = vshrl.u32 %v287, 7
    %v289 = vsub.s32 0, %v288
    %v290 = vrot.slane %v285, %v289
    %v291 = vlaneseq
    %v292 = vshrl.u32 %v291, 7
    %v293 = vsub.s32 1, %v292
    %v294 = vrot.slane %v285, %v293
    %v477 = vunpack.c.l.b16 %v105
    %v478 = vunpack.c.h.b16 %v105
    %v479 = vunpack.c.l.b16 %v106
    %v480 = vunpack.c.h.b16 %v106
    %v481 = vunpack.c.l.b16 %v107
    %v482 = vunpack.c.h.b16 %v107
    %v483 = vunpack.c.l.b16 %v108
    %v484 = vunpack.c.h.b16 %v108
    %v485 = vunpack.c.l.b16 %v109
    %v486 = vunpack.c.h.b16 %v109
    %v487 = vunpack.c.l.b16 %v110
    %v488 = vunpack.c.h.b16 %v110
    %v489 = vunpack.c.l.b16 %v111
    %v490 = vunpack.c.h.b16 %v111
    %v491 = vunpack.c.l.b16 %v112
    %v492 = vunpack.c.h.b16 %v112
    %v493 = vunpack.c.l.b16 %v113
    %v494 = vunpack.c.h.b16 %v113
    %v495 = vunpack.c.l.b16 %v114
    %v496 = vunpack.c.h.b16 %v114
    %v497 = vunpack.c.l.b16 %v115
    %v498 = vunpack.c.h.b16 %v115
    %v499 = vunpack.c.l.b16 %v116
    %v500 = vunpack.c.h.b16 %v116
    %v501 = vunpack.c.l.b16 %v117
    %v502 = vunpack.c.h.b16 %v117
    %v503 = vunpack.c.l.b16 %v118
    %v504 = vunpack.c.h.b16 %v118
    %v505 = vunpack.c.l.b16 %v119
    %v506 = vunpack.c.h.b16 %v119
    %v507 = vunpack.c.l.b16 %v120
    %v508 = vunpack.c.h.b16 %v120
    %v509 = vunpack.c.l.b16 %v121
    %v510 = vunpack.c.h.b16 %v121
    %v511 = vunpack.c.l.b16 %v122
    %v512 = vunpack.c.h.b16 %v122
    %v513 = vunpack.c.l.b16 %v123
    %v514 = vunpack.c.h.b16 %v123
    %v515 = vunpack.c.l.b16 %v124
    %v516 = vunpack.c.h.b16 %v124
    %v517 = vunpack.c.l.b16 %v125
    %v518 = vunpack.c.h.b16 %v125
    %v519 = vunpack.c.l.b16 %v126
    %v520 = vunpack.c.h.b16 %v126
    %v521 = vunpack.c.l.b16 %v127
    %v522 = vunpack.c.h.b16 %v127
    %v523 = vunpack.c.l.b16 %v128
    %v524 = vunpack.c.h.b16 %v128
    %v525 = vunpack.c.l.b16 %v129
    %v526 = vunpack.c.h.b16 %v129
    %v527 = vunpack.c.l.b16 %v130
    %v528 = vunpack.c.h.b16 %v130
    %v529 = vunpack.c.l.b16 %v131
    %v530 = vunpack.c.h.b16 %v131
    %v531 = vunpack.c.l.b16 %v132
    %v532 = vunpack.c.h.b16 %v132
    %v533 = vunpack.c.l.b16 %v133
    %v534 = vunpack.c.h.b16 %v133
    %v535 = vunpack.c.l.b16 %v134
    %v536 = vunpack.c.h.b16 %v134
    %v537 = vunpack.c.l.b16 %v135
    %v538 = vunpack.c.h.b16 %v135
    %v539 = vunpack.c.l.b16 %v136
    %v540 = vunpack.c.h.b16 %v136
    %v541 = vunpack.c.l.b16 %v137
    %v542 = vunpack.c.h.b16 %v137
    %v543 = vunpack.c.l.b16 %v138
    %v544 = vunpack.c.h.b16 %v138
    %v545 = vunpack.c.l.b16 %v139
    %v546 = vunpack.c.h.b16 %v139
    %v547 = vunpack.c.l.b16 %v140
    %v548 = vunpack.c.h.b16 %v140
    %v549 = vunpack.c.l.b16 %v141
    %v550 = vunpack.c.h.b16 %v141
    %v551 = vunpack.c.l.b16 %v142
    %v552 = vunpack.c.h.b16 %v142
    %v553 = vunpack.c.l.b16 %v143
    %v554 = vunpack.c.h.b16 %v143
    %v555 = vunpack.c.l.b16 %v144
    %v556 = vunpack.c.h.b16 %v144
    %v557 = vunpack.c.l.b16 %v145
    %v558 = vunpack.c.h.b16 %v145
    %v559 = vunpack.c.l.b16 %v146
    %v560 = vunpack.c.h.b16 %v146
    %v561 = vunpack.c.l.b16 %v147
    %v562 = vunpack.c.h.b16 %v147
    %v563 = vunpack.c.l.b16 %v148
    %v564 = vunpack.c.h.b16 %v148
    %v565 = vunpack.c.l.b16 %v149
    %v566 = vunpack.c.h.b16 %v149
    %v567 = vunpack.c.l.b16 %v150
    %v568 = vunpack.c.h.b16 %v150
    %v569 = vunpack.c.l.b16 %v151
    %v570 = vunpack.c.h.b16 %v151
    %v571 = vunpack.c.l.b16 %v152
    %v572 = vunpack.c.h.b16 %v152
    %v573 = vunpack.c.l.b16 %v153
    %v574 = vunpack.c.h.b16 %v153
    %v575 = vunpack.c.l.b16 %v154
    %v576 = vunpack.c.h.b16 %v154
    %v577 = vunpack.c.l.b16 %v155
    %v578 = vunpack.c.h.b16 %v155
    %v579 = vunpack.c.l.b16 %v156
    %v580 = vunpack.c.h.b16 %v156
    %v581 = vunpack.c.l.b16 %v157
    %v582 = vunpack.c.h.b16 %v157
    %v583 = vunpack.c.l.b16 %v158
    %v584 = vunpack.c.h.b16 %v158
    %v585 = vunpack.c.l.b16 %v159
    %v586 = vunpack.c.h.b16 %v159
    %v587 = vunpack.c.l.b16 %v160
    %v588 = vunpack.c.h.b16 %v160
    %v589 = vunpack.c.l.b16 %v161
    %v590 = vunpack.c.h.b16 %v161
    %v591 = vunpack.c.l.b16 %v162
    %v592 = vunpack.c.h.b16 %v162
    %v593 = vunpack.c.l.b16 %v163
    %v594 = vunpack.c.h.b16 %v163
    %v595 = vunpack.c.l.b16 %v164
    %v596 = vunpack.c.h.b16 %v164
    %v597 = vunpack.c.l.b16 %v165
    %v598 = vunpack.c.h.b16 %v165
    %v599 = vunpack.c.l.b16 %v166
    %v600 = vunpack.c.h.b16 %v166
    %v601 = vunpack.c.l.b16 %v167
    %v602 = vunpack.c.h.b16 %v167
    %v603 = vunpack.c.l.b16 %v168
    %v604 = vunpack.c.h.b16 %v168
    %v605 = vunpack.c.l.b16 %v169
    %v606 = vunpack.c.h.b16 %v169
    %v607 = vunpack.c.l.b16 %v170
    %v608 = vunpack.c.h.b16 %v170
    %v609 = vunpack.c.l.b16 %v171
    %v610 = vunpack.c.h.b16 %v171
    %v611 = vunpack.c.l.b16 %v172
    %v612 = vunpack.c.h.b16 %v172
    %v613 = vunpack.c.l.b16 %v173
    %v614 = vunpack.c.h.b16 %v173
    %v615 = vunpack.c.l.b16 %v174
    %v616 = vunpack.c.h.b16 %v174
    %v617 = vunpack.c.l.b16 %v175
    %v618 = vunpack.c.h.b16 %v175
    %v619 = vunpack.c.l.b16 %v176
    %v620 = vunpack.c.h.b16 %v176
    %v621 = vunpack.c.l.b16 %v177
    %v622 = vunpack.c.h.b16 %v177
    %v623 = vunpack.c.l.b16 %v178
    %v624 = vunpack.c.h.b16 %v178
    %v625 = vunpack.c.l.b16 %v179
    %v626 = vunpack.c.h.b16 %v179
    %v627 = vunpack.c.l.b16 %v180
    %v628 = vunpack.c.h.b16 %v180
    %v629 = vunpack.c.l.b16 %v181
    %v630 = vunpack.c.h.b16 %v181
    %v631 = vunpack.c.l.b16 %v182
    %v632 = vunpack.c.h.b16 %v182
    %v633 = vunpack.c.l.b16 %v183
    %v634 = vunpack.c.h.b16 %v183
    %v635 = vunpack.c.l.b16 %v184
    %v636 = vunpack.c.h.b16 %v184
    %v637 = vunpack.c.l.b16 %v185
    %v638 = vunpack.c.h.b16 %v185
    %v639 = vunpack.c.l.b16 %v186
    %v640 = vunpack.c.h.b16 %v186
    %v641 = vunpack.c.l.b16 %v187
    %v642 = vunpack.c.h.b16 %v187
    %v643 = vunpack.c.l.b16 %v188
    %v644 = vunpack.c.h.b16 %v188
    %v645 = vunpack.c.l.b16 %v189
    %v646 = vunpack.c.h.b16 %v189
    %v647 = vunpack.c.l.b16 %v190
    %v648 = vunpack.c.h.b16 %v190
    %v649 = vunpack.c.l.b16 %v191
    %v650 = vunpack.c.h.b16 %v191
    %v651 = vunpack.c.l.b16 %v192
    %v652 = vunpack.c.h.b16 %v192
    %v653 = vunpack.c.l.b16 %v193
    %v654 = vunpack.c.h.b16 %v193
    %v655 = vunpack.c.l.b16 %v194
    %v656 = vunpack.c.h.b16 %v194
    %v657 = vunpack.c.l.b16 %v195
    %v658 = vunpack.c.h.b16 %v195
    %v659 = vunpack.c.l.b16 %v196
    %v660 = vunpack.c.h.b16 %v196
    %v661 = vunpack.c.l.b16 %v197
    %v662 = vunpack.c.h.b16 %v197
    %v663 = vunpack.c.l.b16 %v198
    %v664 = vunpack.c.h.b16 %v198
    %v665 = vunpack.c.l.b16 %v199
    %v666 = vunpack.c.h.b16 %v199
    %v667 = vunpack.c.l.b16 %v200
    %v668 = vunpack.c.h.b16 %v200
    %v669 = vunpack.c.l.b16 %v201
    %v670 = vunpack.c.h.b16 %v201
    %v671 = vunpack.c.l.b16 %v202
    %v672 = vunpack.c.h.b16 %v202
    %v673 = vunpack.c.l.b16 %v203
    %v674 = vunpack.c.h.b16 %v203
    %v675 = vunpack.c.l.b16 %v204
    %v676 = vunpack.c.h.b16 %v204
    %v677 = vunpack.c.l.b16 %v205
    %v678 = vunpack.c.h.b16 %v205
    %v679 = vunpack.c.l.b16 %v206
    %v680 = vunpack.c.h.b16 %v206
    %v681 = vunpack.c.l.b16 %v207
    %v682 = vunpack.c.h.b16 %v207
    %v683 = vunpack.c.l.b16 %v208
    %v684 = vunpack.c.h.b16 %v208
    %v685 = vunpack.c.l.b16 %v209
    %v686 = vunpack.c.h.b16 %v209
    %v687 = vunpack.c.l.b16 %v210
    %v688 = vunpack.c.h.b16 %v210
    %v689 = vunpack.c.l.b16 %v211
    %v690 = vunpack.c.h.b16 %v211
    %v691 = vunpack.c.l.b16 %v212
    %v692 = vunpack.c.h.b16 %v212
    %v693 = vunpack.c.l.b16 %v213
    %v694 = vunpack.c.h.b16 %v213
    %v695 = vunpack.c.l.b16 %v214
    %v696 = vunpack.c.h.b16 %v214
    %v697 = vunpack.c.l.b16 %v215
    %v698 = vunpack.c.h.b16 %v215
    %v699 = vunpack.c.l.b16 %v216
    %v700 = vunpack.c.h.b16 %v216
    %v701 = vunpack.c.l.b16 %v217
    %v702 = vunpack.c.h.b16 %v217
    %v703 = vunpack.c.l.b16 %v218
    %v704 = vunpack.c.h.b16 %v218
    %v705 = vunpack.c.l.b16 %v219
    %v706 = vunpack.c.h.b16 %v219
    %v707 = vunpack.c.l.b16 %v220
    %v708 = vunpack.c.h.b16 %v220
    %v709 = vunpack.c.l.b16 %v221
    %v710 = vunpack.c.h.b16 %v221
    %v711 = vunpack.c.l.b16 %v222
    %v712 = vunpack.c.h.b16 %v222
    %v713 = vunpack.c.l.b16 %v223
    %v714 = vunpack.c.h.b16 %v223
    %v715 = vunpack.c.l.b16 %v224
    %v716 = vunpack.c.h.b16 %v224
    %v717 = vunpack.c.l.b16 %v225
    %v718 = vunpack.c.h.b16 %v225
    %v719 = vunpack.c.l.b16 %v226
    %v720 = vunpack.c.h.b16 %v226
    %v721 = vunpack.c.l.b16 %v227
    %v722 = vunpack.c.h.b16 %v227
    %v723 = vunpack.c.l.b16 %v228
    %v724 = vunpack.c.h.b16 %v228
    %v725 = vunpack.c.l.b16 %v229
    %v726 = vunpack.c.h.b16 %v229
    %v727 = vunpack.c.l.b16 %v230
    %v728 = vunpack.c.h.b16 %v230
    %v729 = vunpack.c.l.b16 %v231
    %v730 = vunpack.c.h.b16 %v231
    %v731 = vunpack.c.l.b16 %v232
    %v732 = vunpack.c.h.b16 %v232
    %v733 = vunpack.c.l.b16 %v233
    %v734 = vunpack.c.h.b16 %v233
    %v735 = vunpack.c.l.b16 %v234
    %v736 = vunpack.c.h.b16 %v234
    %v737 = vunpack.c.l.b16 %v235
    %v738 = vunpack.c.h.b16 %v235
    %v739 = vunpack.c.l.b16 %v236
    %v740 = vunpack.c.h.b16 %v236
    %v741 = vunpack.c.l.b16 %v237
    %v742 = vunpack.c.h.b16 %v237
    %v743 = vunpack.c.l.b16 %v238
    %v744 = vunpack.c.h.b16 %v238
    %v745 = vunpack.c.l.b16 %v239
    %v746 = vunpack.c.h.b16 %v239
    %v747 = vunpack.c.l.b16 %v240
    %v748 = vunpack.c.h.b16 %v240
    %v749 = vunpack.c.l.b16 %v241
    %v750 = vunpack.c.h.b16 %v241
    %v751 = vunpack.c.l.b16 %v242
    %v752 = vunpack.c.h.b16 %v242
    %v753 = vunpack.c.l.b16 %v243
    %v754 = vunpack.c.h.b16 %v243
    %v755 = vunpack.c.l.b16 %v244
    %v756 = vunpack.c.h.b16 %v244
    %v757 = vunpack.c.l.b16 %v245
    %v758 = vunpack.c.h.b16 %v245
    %v759 = vunpack.c.l.b16 %v246
    %v760 = vunpack.c.h.b16 %v246
    %v761 = vunpack.c.l.b16 %v247
    %v762 = vunpack.c.h.b16 %v247
    %v763 = vunpack.c.l.b16 %v248
    %v764 = vunpack.c.h.b16 %v248
    %v765 = vunpack.c.l.b16 %v249
    %v766 = vunpack.c.h.b16 %v249
    %v767 = vunpack.c.l.b16 %v250
    %v768 = vunpack.c.h.b16 %v250
    %v769 = vunpack.c.l.b16 %v251
    %v770 = vunpack.c.h.b16 %v251
    %v771 = vunpack.c.l.b16 %v252
    %v772 = vunpack.c.h.b16 %v252
    %v773 = vunpack.c.l.b16 %v253
    %v774 = vunpack.c.h.b16 %v253
    %v775 = vunpack.c.l.b16 %v254
    %v776 = vunpack.c.h.b16 %v254
    %v777 = vunpack.c.l.b16 %v255
    %v778 = vunpack.c.h.b16 %v255
    %v779 = vunpack.c.l.b16 %v256
    %v780 = vunpack.c.h.b16 %v256
    %v781 = vunpack.c.l.b16 %v257
    %v782 = vunpack.c.h.b16 %v257
    %v783 = vunpack.c.l.b16 %v258
    %v784 = vunpack.c.h.b16 %v258
    %v785 = vunpack.c.l.b16 %v259
    %v786 = vunpack.c.h.b16 %v259
    %v787 = vunpack.c.l.b16 %v260
    %v788 = vunpack.c.h.b16 %v260
    %v789 = vunpack.c.l.b16 %v261
    %v790 = vunpack.c.h.b16 %v261
    %v791 = vunpack.c.l.b16 %v262
    %v792 = vunpack.c.h.b16 %v262
    %v793 = vunpack.c.l.b16 %v263
    %v794 = vunpack.c.h.b16 %v263
    %v795 = vunpack.c.l.b16 %v264
    %v796 = vunpack.c.h.b16 %v264
    %v797 = vunpack.c.l.b16 %v265
    %v798 = vunpack.c.h.b16 %v265
    %v799 = vunpack.c.l.b16 %v266
    %v800 = vunpack.c.h.b16 %v266
    %v801 = vunpack.c.l.b16 %v267
    %v802 = vunpack.c.h.b16 %v267
    %v803 = vunpack.c.l.b16 %v268
    %v804 = vunpack.c.h.b16 %v268
    %v805 = vunpack.c.l.b16 %v269
    %v806 = vunpack.c.h.b16 %v269
    %v807 = vunpack.c.l.b16 %v270
    %v808 = vunpack.c.h.b16 %v270
    %v809 = vunpack.c.l.b16 %v271
    %v810 = vunpack.c.h.b16 %v271
    %v811 = vunpack.c.l.b16 %v272
    %v812 = vunpack.c.h.b16 %v272
    %v813 = vunpack.c.l.b16 %v273
    %v814 = vunpack.c.h.b16 %v273
    %v815 = vunpack.c.l.b16 %v274
    %v816 = vunpack.c.h.b16 %v274
    %v817 = vunpack.c.l.b16 %v275
    %v818 = vunpack.c.h.b16 %v275
    %v819 = vunpack.c.l.b16 %v276
    %v820 = vunpack.c.h.b16 %v276
    %v821 = vunpack.c.l.b16 %v277
    %v822 = vunpack.c.h.b16 %v277
    %v823 = vunpack.c.l.b16 %v278
    %v824 = vunpack.c.h.b16 %v278
    %v825 = vunpack.c.l.b16 %v279
    %v826 = vunpack.c.h.b16 %v279
    %v827 = vunpack.c.l.b16 %v280
    %v828 = vunpack.c.h.b16 %v280
    %v829 = vunpack.c.l.b16 %v281
    %v830 = vunpack.c.h.b16 %v281
    %v831 = vunpack.c.l.b16 %v282
    %v832 = vunpack.c.h.b16 %v282
    %v833 = vunpack.c.l.b16 %v283
    %v834 = vunpack.c.h.b16 %v283
    %v835 = vunpack.c.l.b16 %v284
    %v836 = vunpack.c.h.b16 %v284
    %v837 = vpack.c.b16 %v479, %v477
    %v838 = vpack.c.b16 %v480, %v478
    %v839 = vpack.c.b16 %v483, %v481
    %v840 = vpack.c.b16 %v484, %v482
    %v841 = vpack.c.b16 %v487, %v485
    %v842 = vpack.c.b16 %v488, %v486
    %v843 = vpack.c.b16 %v491, %v489
    %v844 = vpack.c.b16 %v492, %v490
    %v845 = vpack.c.b16 %v495, %v493
    %v846 = vpack.c.b16 %v496, %v494
    %v847 = vpack.c.b16 %v499, %v497
    %v848 = vpack.c.b16 %v500, %v498
    %v849 = vpack.c.b16 %v503, %v501
    %v850 = vpack.c.b16 %v504, %v502
    %v851 = vpack.c.b16 %v507, %v505
    %v852 = vpack.c.b16 %v508, %v506
    %v853 = vpack.c.b16 %v511, %v509
    %v854 = vpack.c.b16 %v512, %v510
    %v855 = vpack.c.b16 %v515, %v513
    %v856 = vpack.c.b16 %v516, %v514
    %v857 = vpack.c.b16 %v519, %v517
    %v858 = vpack.c.b16 %v520, %v518
    %v859 = vpack.c.b16 %v523, %v521
    %v860 = vpack.c.b16 %v524, %v522
    %v861 = vpack.c.b16 %v527, %v525
    %v862 = vpack.c.b16 %v528, %v526
    %v863 = vpack.c.b16 %v531, %v529
    %v864 = vpack.c.b16 %v532, %v530
    %v865 = vpack.c.b16 %v535, %v533
    %v866 = vpack.c.b16 %v536, %v534
    %v867 = vpack.c.b16 %v539, %v537
    %v868 = vpack.c.b16 %v540, %v538
    %v869 = vpack.c.b16 %v543, %v541
    %v870 = vpack.c.b16 %v544, %v542
    %v871 = vpack.c.b16 %v547, %v545
    %v872 = vpack.c.b16 %v548, %v546
    %v873 = vpack.c.b16 %v551, %v549
    %v874 = vpack.c.b16 %v552, %v550
    %v875 = vpack.c.b16 %v555, %v553
    %v876 = vpack.c.b16 %v556, %v554
    %v877 = vpack.c.b16 %v559, %v557
    %v878 = vpack.c.b16 %v560, %v558
    %v879 = vpack.c.b16 %v563, %v561
    %v880 = vpack.c.b16 %v564, %v562
    %v881 = vpack.c.b16 %v567, %v565
    %v882 = vpack.c.b16 %v568, %v566
    %v883 = vpack.c.b16 %v571, %v569
    %v884 = vpack.c.b16 %v572, %v570
    %v885 = vpack.c.b16 %v575, %v573
    %v886 = vpack.c.b16 %v576, %v574
    %v887 = vpack.c.b16 %v579, %v577
    %v888 = vpack.c.b16 %v580, %v578
    %v889 = vpack.c.b16 %v583, %v581
    %v890 = vpack.c.b16 %v584, %v582
    %v891 = vpack.c.b16 %v587, %v585
    %v892 = vpack.c.b16 %v588, %v586
    %v893 = vpack.c.b16 %v591, %v589
    %v894 = vpack.c.b16 %v592, %v590
    %v895 = vpack.c.b16 %v595, %v593
    %v896 = vpack.c.b16 %v596, %v594
    %v897 = vpack.c.b16 %v599, %v597
    %v898 = vpack.c.b16 %v600, %v598
    %v899 = vpack.c.b16 %v603, %v601
    %v900 = vpack.c.b16 %v604, %v602
    %v901 = vpack.c.b16 %v607, %v605
    %v902 = vpack.c.b16 %v608, %v606
    %v903 = vpack.c.b16 %v611, %v609
    %v904 = vpack.c.b16 %v612, %v610
    %v905 = vpack.c.b16 %v615, %v613
    %v906 = vpack.c.b16 %v616, %v614
    %v907 = vpack.c.b16 %v619, %v617
    %v908 = vpack.c.b16 %v620, %v618
    %v909 = vpack.c.b16 %v623, %v621
    %v910 = vpack.c.b16 %v624, %v622
    %v911 = vpack.c.b16 %v627, %v625
    %v912 = vpack.c.b16 %v628, %v626
    %v913 = vpack.c.b16 %v631, %v629
    %v914 = vpack.c.b16 %v632, %v630
    %v915 = vpack.c.b16 %v635, %v633
    %v916 = vpack.c.b16 %v636, %v634
    %v917 = vpack.c.b16 %v639, %v637
    %v918 = vpack.c.b16 %v640, %v638
    %v919 = vpack.c.b16 %v643, %v641
    %v920 = vpack.c.b16 %v644, %v642
    %v921 = vpack.c.b16 %v647, %v645
    %v922 = vpack.c.b16 %v648, %v646
    %v923 = vpack.c.b16 %v651, %v649
    %v924 = vpack.c.b16 %v652, %v650
    %v925 = vpack.c.b16 %v655, %v653
    %v926 = vpack.c.b16 %v656, %v654
    %v927 = vpack.c.b16 %v659, %v657
    %v928 = vpack.c.b16 %v660, %v658
    %v929 = vpack.c.b16 %v663, %v661
    %v930 = vpack.c.b16 %v664, %v662
    %v931 = vpack.c.b16 %v667, %v665
    %v932 = vpack.c.b16 %v668, %v666
    %v933 = vpack.c.b16 %v671, %v669
    %v934 = vpack.c.b16 %v672, %v670
    %v935 = vpack.c.b16 %v675, %v673
    %v936 = vpack.c.b16 %v676, %v674
    %v937 = vpack.c.b16 %v679, %v677
    %v938 = vpack.c.b16 %v680, %v678
    %v939 = vpack.c.b16 %v683, %v681
    %v940 = vpack.c.b16 %v684, %v682
    %v941 = vpack.c.b16 %v687, %v685
    %v942 = vpack.c.b16 %v688, %v686
    %v943 = vpack.c.b16 %v691, %v689
    %v944 = vpack.c.b16 %v692, %v690
    %v945 = vpack.c.b16 %v695, %v693
    %v946 = vpack.c.b16 %v696, %v694
    %v947 = vpack.c.b16 %v699, %v697
    %v948 = vpack.c.b16 %v700, %v698
    %v949 = vpack.c.b16 %v703, %v701
    %v950 = vpack.c.b16 %v704, %v702
    %v951 = vpack.c.b16 %v707, %v705
    %v952 = vpack.c.b16 %v708, %v706
    %v953 = vpack.c.b16 %v711, %v709
    %v954 = vpack.c.b16 %v712, %v710
    %v955 = vpack.c.b16 %v715, %v713
    %v956 = vpack.c.b16 %v716, %v714
    %v957 = vpack.c.b16 %v719, %v717
    %v958 = vpack.c.b16 %v720, %v718
    %v959 = vpack.c.b16 %v723, %v721
    %v960 = vpack.c.b16 %v724, %v722
    %v961 = vpack.c.b16 %v727, %v725
    %v962 = vpack.c.b16 %v728, %v726
    %v963 = vpack.c.b16 %v731, %v729
    %v964 = vpack.c.b16 %v732, %v730
    %v965 = vpack.c.b16 %v735, %v733
    %v966 = vpack.c.b16 %v736, %v734
    %v967 = vpack.c.b16 %v739, %v737
    %v968 = vpack.c.b16 %v740, %v738
    %v969 = vpack.c.b16 %v743, %v741
    %v970 = vpack.c.b16 %v744, %v742
    %v971 = vpack.c.b16 %v747, %v745
    %v972 = vpack.c.b16 %v748, %v746
    %v973 = vpack.c.b16 %v751, %v749
    %v974 = vpack.c.b16 %v752, %v750
    %v975 = vpack.c.b16 %v755, %v753
    %v976 = vpack.c.b16 %v756, %v754
    %v977 = vpack.c.b16 %v759, %v757
    %v978 = vpack.c.b16 %v760, %v758
    %v979 = vpack.c.b16 %v763, %v761
    %v980 = vpack.c.b16 %v764, %v762
    %v981 = vpack.c.b16 %v767, %v765
    %v982 = vpack.c.b16 %v768, %v766
    %v983 = vpack.c.b16 %v771, %v769
    %v984 = vpack.c.b16 %v772, %v770
    %v985 = vpack.c.b16 %v775, %v773
    %v986 = vpack.c.b16 %v776, %v774
    %v987 = vpack.c.b16 %v779, %v777
    %v988 = vpack.c.b16 %v780, %v778
    %v989 = vpack.c.b16 %v783, %v781
    %v990 = vpack.c.b16 %v784, %v782
    %v991 = vpack.c.b16 %v787, %v785
    %v992 = vpack.c.b16 %v788, %v786
    %v993 = vpack.c.b16 %v791, %v789
    %v994 = vpack.c.b16 %v792, %v790
    %v995 = vpack.c.b16 %v795, %v793
    %v996 = vpack.c.b16 %v796, %v794
    %v997 = vpack.c.b16 %v799, %v797
    %v998 = vpack.c.b16 %v800, %v798
    %v999 = vpack.c.b16 %v803, %v801
    %v1000 = vpack.c.b16 %v804, %v802
    %v1001 = vpack.c.b16 %v807, %v805
    %v1002 = vpack.c.b16 %v808, %v806
    %v1003 = vpack.c.b16 %v811, %v809
    %v1004 = vpack.c.b16 %v812, %v810
    %v1005 = vpack.c.b16 %v815, %v813
    %v1006 = vpack.c.b16 %v816, %v814
    %v1007 = vpack.c.b16 %v819, %v817
    %v1008 = vpack.c.b16 %v820, %v818
    %v1009 = vpack.c.b16 %v823, %v821
    %v1010 = vpack.c.b16 %v824, %v822
    %v1011 = vpack.c.b16 %v827, %v825
    %v1012 = vpack.c.b16 %v828, %v826
    %v1013 = vpack.c.b16 %v831, %v829
    %v1014 = vpack.c.b16 %v832, %v830
    %v1015 = vpack.c.b16 %v835, %v833
    %v1016 = vpack.c.b16 %v836, %v834
    %vm1195 = vcmask 211968
    %v1197 = vsel %vm1195, %v104, 0
    %vm1199 = vcmask 1044480
    %v1201 = vsel %vm1199, %v1015, 0
    %v1204 = vsel %vm1199, %v1016, 0
    %1206 = vmatprep.subr.bf16.mxu0 %v838
    %1207 = vmatpush1.bf16.msra.mxu0 %v837
    %1208 = vmatprep.subr.bf16.mxu0 %v840
    %1209 = vmatpush1.bf16.msra.mxu0 %v839
    %1210 = vmatprep.subr.bf16.mxu0 %v842
    %1211 = vmatpush1.bf16.msra.mxu0 %v841
    %1212 = vmatprep.subr.bf16.mxu0 %v844
    %1213 = vmatpush1.bf16.msra.mxu0 %v843
    %1214 = vmatprep.subr.bf16.mxu0 %v846
    %1215 = vmatpush1.bf16.msra.mxu0 %v845
    %1216 = vmatprep.subr.bf16.mxu0 %v848
    %1217 = vmatpush1.bf16.msra.mxu0 %v847
    %1218 = vmatprep.subr.bf16.mxu0 %v850
    %1219 = vmatpush1.bf16.msra.mxu0 %v849
    %1220 = vmatprep.subr.bf16.mxu0 %v852
    %1221 = vmatpush1.bf16.msra.mxu0 %v851
    %1222 = vmatprep.subr.bf16.mxu0 %v854
    %1223 = vmatpush1.bf16.msra.mxu0 %v853
    %1224 = vmatprep.subr.bf16.mxu0 %v856
    %1225 = vmatpush1.bf16.msra.mxu0 %v855
    %1226 = vmatprep.subr.bf16.mxu0 %v858
    %1227 = vmatpush1.bf16.msra.mxu0 %v857
    %1228 = vmatprep.subr.bf16.mxu0 %v860
    %1229 = vmatpush1.bf16.msra.mxu0 %v859
    %1230 = vmatprep.subr.bf16.mxu0 %v862
    %1231 = vmatpush1.bf16.msra.mxu0 %v861
    %1232 = vmatprep.subr.bf16.mxu0 %v864
    %1233 = vmatpush1.bf16.msra.mxu0 %v863
    %1234 = vmatprep.subr.bf16.mxu0 %v866
    %1235 = vmatpush1.bf16.msra.mxu0 %v865
    %1236 = vmatprep.subr.bf16.mxu0 %v868
    %1237 = vmatpush1.bf16.msra.mxu0 %v867
    %1238 = vmatprep.mubr.bf16.mxu0 %v94
    %1239 = vmatmul.mubr.bf16.gmra.mrb[0].mxu0 %v93
    %v1240 = vpop.f32.mrb[0].mxu0
    %v1241 = vadd.f32 %v290, %v1240
    %v1242 = vpop.f32.mrb[0].mxu0
    %v1243 = vadd.f32 %v294, %v1242
    %v1244 = vpop.f32.mrb[0].mxu0
    %v1245 = vpop.f32.mrb[0].mxu0
    %1246 = vdwg.mxu0
    %1247 = vmatprep.subr.bf16.mxu0 %v870
    %1248 = vmatpush1.bf16.msra.mxu0 %v869
    %1249 = vmatprep.subr.bf16.mxu0 %v872
    %1250 = vmatpush1.bf16.msra.mxu0 %v871
    %1251 = vmatprep.subr.bf16.mxu0 %v874
    %1252 = vmatpush1.bf16.msra.mxu0 %v873
    %1253 = vmatprep.subr.bf16.mxu0 %v876
    %1254 = vmatpush1.bf16.msra.mxu0 %v875
    %1255 = vmatprep.subr.bf16.mxu0 %v878
    %1256 = vmatpush1.bf16.msra.mxu0 %v877
    %1257 = vmatprep.subr.bf16.mxu0 %v880
    %1258 = vmatpush1.bf16.msra.mxu0 %v879
    %1259 = vmatprep.subr.bf16.mxu0 %v882
    %1260 = vmatpush1.bf16.msra.mxu0 %v881
    %1261 = vmatprep.subr.bf16.mxu0 %v884
    %1262 = vmatpush1.bf16.msra.mxu0 %v883
    %1263 = vmatprep.subr.bf16.mxu0 %v886
    %1264 = vmatpush1.bf16.msra.mxu0 %v885
    %1265 = vmatprep.subr.bf16.mxu0 %v888
    %1266 = vmatpush1.bf16.msra.mxu0 %v887
    %1267 = vmatprep.subr.bf16.mxu0 %v890
    %1268 = vmatpush1.bf16.msra.mxu0 %v889
    %1269 = vmatprep.subr.bf16.mxu0 %v892
    %1270 = vmatpush1.bf16.msra.mxu0 %v891
    %1271 = vmatprep.subr.bf16.mxu0 %v894
    %1272 = vmatpush1.bf16.msra.mxu0 %v893
    %1273 = vmatprep.subr.bf16.mxu0 %v896
    %1274 = vmatpush1.bf16.msra.mxu0 %v895
    %1275 = vmatprep.subr.bf16.mxu0 %v898
    %1276 = vmatpush1.bf16.msra.mxu0 %v897
    %1277 = vmatprep.subr.bf16.mxu0 %v900
    %1278 = vmatpush1.bf16.msra.mxu0 %v899
    %1279 = vmatprep.mubr.bf16.mxu0 %v96
    %1280 = vmatmul.mubr.bf16.gmra.mrb[0].mxu0 %v95
    %v1281 = vpop.f32.mrb[0].mxu0
    %v1282 = vadd.f32 %v1241, %v1281
    %v1283 = vpop.f32.mrb[0].mxu0
    %v1284 = vadd.f32 %v1243, %v1283
    %v1285 = vpop.f32.mrb[0].mxu0
    %v1286 = vpop.f32.mrb[0].mxu0
    %1287 = vdwg.mxu0
    %1288 = vmatprep.subr.bf16.mxu0 %v902
    %1289 = vmatpush1.bf16.msra.mxu0 %v901
    %1290 = vmatprep.subr.bf16.mxu0 %v904
    %1291 = vmatpush1.bf16.msra.mxu0 %v903
    %1292 = vmatprep.subr.bf16.mxu0 %v906
    %1293 = vmatpush1.bf16.msra.mxu0 %v905
    %1294 = vmatprep.subr.bf16.mxu0 %v908
    %1295 = vmatpush1.bf16.msra.mxu0 %v907
    %1296 = vmatprep.subr.bf16.mxu0 %v910
    %1297 = vmatpush1.bf16.msra.mxu0 %v909
    %1298 = vmatprep.subr.bf16.mxu0 %v912
    %1299 = vmatpush1.bf16.msra.mxu0 %v911
    %1300 = vmatprep.subr.bf16.mxu0 %v914
    %1301 = vmatpush1.bf16.msra.mxu0 %v913
    %1302 = vmatprep.subr.bf16.mxu0 %v916
    %1303 = vmatpush1.bf16.msra.mxu0 %v915
    %1304 = vmatprep.subr.bf16.mxu0 %v918
    %1305 = vmatpush1.bf16.msra.mxu0 %v917
    %1306 = vmatprep.subr.bf16.mxu0 %v920
    %1307 = vmatpush1.bf16.msra.mxu0 %v919
    %1308 = vmatprep.subr.bf16.mxu0 %v922
    %1309 = vmatpush1.bf16.msra.mxu0 %v921
    %1310 = vmatprep.subr.bf16.mxu0 %v924
    %1311 = vmatpush1.bf16.msra.mxu0 %v923
    %1312 = vmatprep.subr.bf16.mxu0 %v926
    %1313 = vmatpush1.bf16.msra.mxu0 %v925
    %1314 = vmatprep.subr.bf16.mxu0 %v928
    %1315 = vmatpush1.bf16.msra.mxu0 %v927
    %1316 = vmatprep.subr.bf16.mxu0 %v930
    %1317 = vmatpush1.bf16.msra.mxu0 %v929
    %1318 = vmatprep.subr.bf16.mxu0 %v932
    %1319 = vmatpush1.bf16.msra.mxu0 %v931
    %1320 = vmatprep.mubr.bf16.mxu0 %v98
    %1321 = vmatmul.mubr.bf16.gmra.mrb[0].mxu0 %v97
    %v1322 = vpop.f32.mrb[0].mxu0
    %v1323 = vadd.f32 %v1282, %v1322
    %v1324 = vpop.f32.mrb[0].mxu0
    %v1325 = vadd.f32 %v1284, %v1324
    %v1326 = vpop.f32.mrb[0].mxu0
    %v1327 = vpop.f32.mrb[0].mxu0
    %1328 = vdwg.mxu0
    %1329 = vmatprep.subr.bf16.mxu0 %v934
    %1330 = vmatpush1.bf16.msra.mxu0 %v933
    %1331 = vmatprep.subr.bf16.mxu0 %v936
    %1332 = vmatpush1.bf16.msra.mxu0 %v935
    %1333 = vmatprep.subr.bf16.mxu0 %v938
    %1334 = vmatpush1.bf16.msra.mxu0 %v937
    %1335 = vmatprep.subr.bf16.mxu0 %v940
    %1336 = vmatpush1.bf16.msra.mxu0 %v939
    %1337 = vmatprep.subr.bf16.mxu0 %v942
    %1338 = vmatpush1.bf16.msra.mxu0 %v941
    %1339 = vmatprep.subr.bf16.mxu0 %v944
    %1340 = vmatpush1.bf16.msra.mxu0 %v943
    %1341 = vmatprep.subr.bf16.mxu0 %v946
    %1342 = vmatpush1.bf16.msra.mxu0 %v945
    %1343 = vmatprep.subr.bf16.mxu0 %v948
    %1344 = vmatpush1.bf16.msra.mxu0 %v947
    %1345 = vmatprep.subr.bf16.mxu0 %v950
    %1346 = vmatpush1.bf16.msra.mxu0 %v949
    %1347 = vmatprep.subr.bf16.mxu0 %v952
    %1348 = vmatpush1.bf16.msra.mxu0 %v951
    %1349 = vmatprep.subr.bf16.mxu0 %v954
    %1350 = vmatpush1.bf16.msra.mxu0 %v953
    %1351 = vmatprep.subr.bf16.mxu0 %v956
    %1352 = vmatpush1.bf16.msra.mxu0 %v955
    %1353 = vmatprep.subr.bf16.mxu0 %v958
    %1354 = vmatpush1.bf16.msra.mxu0 %v957
    %1355 = vmatprep.subr.bf16.mxu0 %v960
    %1356 = vmatpush1.bf16.msra.mxu0 %v959
    %1357 = vmatprep.subr.bf16.mxu0 %v962
    %1358 = vmatpush1.bf16.msra.mxu0 %v961
    %1359 = vmatprep.subr.bf16.mxu0 %v964
    %1360 = vmatpush1.bf16.msra.mxu0 %v963
    %1361 = vmatprep.mubr.bf16.mxu0 %v100
    %1362 = vmatmul.mubr.bf16.gmra.mrb[0].mxu0 %v99
    %v1363 = vpop.f32.mrb[0].mxu0
    %v1364 = vadd.f32 %v1323, %v1363
    %v1365 = vpop.f32.mrb[0].mxu0
    %v1366 = vadd.f32 %v1325, %v1365
    %v1367 = vpop.f32.mrb[0].mxu0
    %v1368 = vpop.f32.mrb[0].mxu0
    %1369 = vdwg.mxu0
    %1370 = vmatprep.subr.bf16.mxu0 %v966
    %1371 = vmatpush1.bf16.msra.mxu0 %v965
    %1372 = vmatprep.subr.bf16.mxu0 %v968
    %1373 = vmatpush1.bf16.msra.mxu0 %v967
    %1374 = vmatprep.subr.bf16.mxu0 %v970
    %1375 = vmatpush1.bf16.msra.mxu0 %v969
    %1376 = vmatprep.subr.bf16.mxu0 %v972
    %1377 = vmatpush1.bf16.msra.mxu0 %v971
    %1378 = vmatprep.subr.bf16.mxu0 %v974
    %1379 = vmatpush1.bf16.msra.mxu0 %v973
    %1380 = vmatprep.subr.bf16.mxu0 %v976
    %1381 = vmatpush1.bf16.msra.mxu0 %v975
    %1382 = vmatprep.subr.bf16.mxu0 %v978
    %1383 = vmatpush1.bf16.msra.mxu0 %v977
    %1384 = vmatprep.subr.bf16.mxu0 %v980
    %1385 = vmatpush1.bf16.msra.mxu0 %v979
    %1386 = vmatprep.subr.bf16.mxu0 %v982
    %1387 = vmatpush1.bf16.msra.mxu0 %v981
    %1388 = vmatprep.subr.bf16.mxu0 %v984
    %1389 = vmatpush1.bf16.msra.mxu0 %v983
    %1390 = vmatprep.subr.bf16.mxu0 %v986
    %1391 = vmatpush1.bf16.msra.mxu0 %v985
    %1392 = vmatprep.subr.bf16.mxu0 %v988
    %1393 = vmatpush1.bf16.msra.mxu0 %v987
    %1394 = vmatprep.subr.bf16.mxu0 %v990
    %1395 = vmatpush1.bf16.msra.mxu0 %v989
    %1396 = vmatprep.subr.bf16.mxu0 %v992
    %1397 = vmatpush1.bf16.msra.mxu0 %v991
    %1398 = vmatprep.subr.bf16.mxu0 %v994
    %1399 = vmatpush1.bf16.msra.mxu0 %v993
    %1400 = vmatprep.subr.bf16.mxu0 %v996
    %1401 = vmatpush1.bf16.msra.mxu0 %v995
    %1402 = vmatprep.mubr.bf16.mxu0 %v102
    %1403 = vmatmul.mubr.bf16.gmra.mrb[0].mxu0 %v101
    %v1404 = vpop.f32.mrb[0].mxu0
    %v1405 = vadd.f32 %v1364, %v1404
    %v1406 = vpop.f32.mrb[0].mxu0
    %v1407 = vadd.f32 %v1366, %v1406
    %v1408 = vpop.f32.mrb[0].mxu0
    %v1409 = vpop.f32.mrb[0].mxu0
    %1410 = vdwg.mxu0
    %1411 = vmatprep.subr.bf16.mxu0 %v998
    %1412 = vmatpush1.bf16.msra.mxu0 %v997
    %1413 = vmatprep.subr.bf16.mxu0 %v1000
    %1414 = vmatpush1.bf16.msra.mxu0 %v999
    %1415 = vmatprep.subr.bf16.mxu0 %v1002
    %1416 = vmatpush1.bf16.msra.mxu0 %v1001
    %1417 = vmatprep.subr.bf16.mxu0 %v1004
    %1418 = vmatpush1.bf16.msra.mxu0 %v1003
    %1419 = vmatprep.subr.bf16.mxu0 %v1006
    %1420 = vmatpush1.bf16.msra.mxu0 %v1005
    %1421 = vmatprep.subr.bf16.mxu0 %v1008
    %1422 = vmatpush1.bf16.msra.mxu0 %v1007
    %1423 = vmatprep.subr.bf16.mxu0 %v1010
    %1424 = vmatpush1.bf16.msra.mxu0 %v1009
    %1425 = vmatprep.subr.bf16.mxu0 %v1012
    %1426 = vmatpush1.bf16.msra.mxu0 %v1011
    %1427 = vmatprep.subr.bf16.mxu0 %v1014
    %1428 = vmatpush1.bf16.msra.mxu0 %v1013
    %1429 = vmatprep.subr.bf16.mxu0 %v1204
    %1430 = vmatpush1.bf16.msra.mxu0 %v1201
    %1431 = vmatprep.subr.bf16.mxu0 0
    %1432 = vmatpush1.bf16.msra.mxu0 0
    %1433 = vmatprep.subr.bf16.mxu0 0
    %1434 = vmatpush1.bf16.msra.mxu0 0
    %1435 = vmatprep.subr.bf16.mxu0 0
    %1436 = vmatpush1.bf16.msra.mxu0 0
    %1437 = vmatprep.subr.bf16.mxu0 0
    %1438 = vmatpush1.bf16.msra.mxu0 0
    %1439 = vmatprep.subr.bf16.mxu0 0
    %1440 = vmatpush1.bf16.msra.mxu0 0
    %1441 = vmatprep.subr.bf16.mxu0 0
    %1442 = vmatpush1.bf16.msra.mxu0 0
    %1443 = vmatprep.mubr.bf16.mxu0 %v1197
    %1444 = vmatmul.mubr.bf16.gmra.mrb[0].mxu0 %v103
    %v1445 = vpop.f32.mrb[0].mxu0
    %v1446 = vadd.f32 %v1405, %v1445
    %v1447 = vpop.f32.mrb[0].mxu0
    %v1448 = vadd.f32 %v1407, %v1447
    %v1449 = vpop.f32.mrb[0].mxu0
    %v1450 = vpop.f32.mrb[0].mxu0
    %1451 = vdwg.mxu0
    %v1452 = vmax.f32 %v1446, 0.0
    %v1453 = vmax.f32 %v1448, 0.0
    %v1454 = vpack.c.bf16 %v1452, %v1452
    %v1455 = vpack.c.bf16 %v1453, %v1453
    %v1456 = vld [vmem:[#allocation7] sm:$0xf]
    %v1457 = vld [vmem:[#allocation7 + $0x4] sm:$0xf]
    %v1458 = vld [vmem:[#allocation7 + $0x8] sm:$0xf]
    %v1459 = vld [vmem:[#allocation7 + $0xc] sm:$0xf]
    %v1460 = vld [vmem:[#allocation7 + $0x10] sm:$0xf]
    %v1461 = vld [vmem:[#allocation7 + $0x14] sm:$0xf]
    %v1462 = vld [vmem:[#allocation7 + $0x18] sm:$0xf]
    %v1463 = vld [vmem:[#allocation7 + $0x1c] sm:$0xf]
    %v1464 = vld [vmem:[#allocation7 + $0x20] sm:$0xf]
    %v1465 = vld [vmem:[#allocation7 + $0x24] sm:$0xf]
    %v1466 = vld [vmem:[#allocation7 + $0x28] sm:$0xf]
    %v1467 = vld [vmem:[#allocation7 + $0x2c] sm:$0xf]
    %v1468 = vld [vmem:[#allocation7 + $0x30] sm:$0xf]
    %v1469 = vld [vmem:[#allocation7 + $0x34] sm:$0xf]
    %v1470 = vld [vmem:[#allocation7 + $0x38] sm:$0xf]
    %v1471 = vld [vmem:[#allocation7 + $0x3c] sm:$0xf]
    %v1472 = vld [vmem:[#allocation7 + $0x40] sm:$0xf]
    %v1473 = vld [vmem:[#allocation7 + $0x44] sm:$0xf]
    %v1474 = vld [vmem:[#allocation7 + $0x48] sm:$0xf]
    %v1475 = vld [vmem:[#allocation7 + $0x4c] sm:$0xf]
    %v1476 = vld [vmem:[#allocation7 + $0x50] sm:$0xf]
    %v1477 = vld [vmem:[#allocation7 + $0x54] sm:$0xf]
    %v1478 = vld [vmem:[#allocation7 + $0x58] sm:$0xf]
    %v1479 = vld [vmem:[#allocation7 + $0x5c] sm:$0xf]
    %v1480 = vld [vmem:[#allocation7 + $0x60] sm:$0xf]
    %v1481 = vld [vmem:[#allocation7 + $0x64] sm:$0xf]
    %v1482 = vld [vmem:[#allocation7 + $0x68] sm:$0xf]
    %v1483 = vld [vmem:[#allocation7 + $0x6c] sm:$0xf]
    %v1484 = vld [vmem:[#allocation7 + $0x70] sm:$0xf]
    %v1485 = vld [vmem:[#allocation7 + $0x74] sm:$0xf]
    %v1486 = vld [vmem:[#allocation7 + $0x78] sm:$0xf]
    %v1487 = vld [vmem:[#allocation7 + $0x7c] sm:$0xf]
    %v1488 = vld [vmem:[%s4] sm:$0x1]
    %v1490 = vlaneseq
    %v1491 = vshrl.u32 %v1490, 7
    %v1492 = vsub.s32 0, %v1491
    %v1493 = vrot.slane %v1488, %v1492
    %v1527 = vunpack.c.l.b16 %v1456
    %v1528 = vunpack.c.l.b16 %v1457
    %v1529 = vunpack.c.l.b16 %v1458
    %v1530 = vunpack.c.l.b16 %v1459
    %v1531 = vunpack.c.l.b16 %v1460
    %v1532 = vunpack.c.l.b16 %v1461
    %v1533 = vunpack.c.l.b16 %v1462
    %v1534 = vunpack.c.l.b16 %v1463
    %v1535 = vunpack.c.l.b16 %v1464
    %v1536 = vunpack.c.l.b16 %v1465
    %v1537 = vunpack.c.l.b16 %v1466
    %v1538 = vunpack.c.l.b16 %v1467
    %v1539 = vunpack.c.l.b16 %v1468
    %v1540 = vunpack.c.l.b16 %v1469
    %v1541 = vunpack.c.l.b16 %v1470
    %v1542 = vunpack.c.l.b16 %v1471
    %v1543 = vunpack.c.l.b16 %v1472
    %v1544 = vunpack.c.l.b16 %v1473
    %v1545 = vunpack.c.l.b16 %v1474
    %v1546 = vunpack.c.l.b16 %v1475
    %v1547 = vunpack.c.l.b16 %v1476
    %v1548 = vunpack.c.l.b16 %v1477
    %v1549 = vunpack.c.l.b16 %v1478
    %v1550 = vunpack.c.l.b16 %v1479
    %v1551 = vunpack.c.l.b16 %v1480
    %v1552 = vunpack.c.l.b16 %v1481
    %v1553 = vunpack.c.l.b16 %v1482
    %v1554 = vunpack.c.l.b16 %v1483
    %v1555 = vunpack.c.l.b16 %v1484
    %v1556 = vunpack.c.l.b16 %v1485
    %v1557 = vunpack.c.l.b16 %v1486
    %v1558 = vunpack.c.l.b16 %v1487
    %v1559 = vpack.c.b16 %v1528, %v1527
    %v1560 = vpack.c.b16 %v1530, %v1529
    %v1561 = vpack.c.b16 %v1532, %v1531
    %v1562 = vpack.c.b16 %v1534, %v1533
    %v1563 = vpack.c.b16 %v1536, %v1535
    %v1564 = vpack.c.b16 %v1538, %v1537
    %v1565 = vpack.c.b16 %v1540, %v1539
    %v1566 = vpack.c.b16 %v1542, %v1541
    %v1567 = vpack.c.b16 %v1544, %v1543
    %v1568 = vpack.c.b16 %v1546, %v1545
    %v1569 = vpack.c.b16 %v1548, %v1547
    %v1570 = vpack.c.b16 %v1550, %v1549
    %v1571 = vpack.c.b16 %v1552, %v1551
    %v1572 = vpack.c.b16 %v1554, %v1553
    %v1573 = vpack.c.b16 %v1556, %v1555
    %v1574 = vpack.c.b16 %v1558, %v1557
    %1591 = vmatprep.subr.bf16.mxu0 0
    %1592 = vmatpush1.bf16.msra.mxu0 %v1559
    %1593 = vmatprep.subr.bf16.mxu0 0
    %1594 = vmatpush1.bf16.msra.mxu0 %v1560
    %1595 = vmatprep.subr.bf16.mxu0 0
    %1596 = vmatpush1.bf16.msra.mxu0 %v1561
    %1597 = vmatprep.subr.bf16.mxu0 0
    %1598 = vmatpush1.bf16.msra.mxu0 %v1562
    %1599 = vmatprep.subr.bf16.mxu0 0
    %1600 = vmatpush1.bf16.msra.mxu0 %v1563
    %1601 = vmatprep.subr.bf16.mxu0 0
    %1602 = vmatpush1.bf16.msra.mxu0 %v1564
    %1603 = vmatprep.subr.bf16.mxu0 0
    %1604 = vmatpush1.bf16.msra.mxu0 %v1565
    %1605 = vmatprep.subr.bf16.mxu0 0
    %1606 = vmatpush1.bf16.msra.mxu0 %v1566
    %1607 = vmatprep.subr.bf16.mxu0 0
    %1608 = vmatpush1.bf16.msra.mxu0 %v1567
    %1609 = vmatprep.subr.bf16.mxu0 0
    %1610 = vmatpush1.bf16.msra.mxu0 %v1568
    %1611 = vmatprep.subr.bf16.mxu0 0
    %1612 = vmatpush1.bf16.msra.mxu0 %v1569
    %1613 = vmatprep.subr.bf16.mxu0 0
    %1614 = vmatpush1.bf16.msra.mxu0 %v1570
    %1615 = vmatprep.subr.bf16.mxu0 0
    %1616 = vmatpush1.bf16.msra.mxu0 %v1571
    %1617 = vmatprep.subr.bf16.mxu0 0
    %1618 = vmatpush1.bf16.msra.mxu0 %v1572
    %1619 = vmatprep.subr.bf16.mxu0 0
    %1620 = vmatpush1.bf16.msra.mxu0 %v1573
    %1621 = vmatprep.subr.bf16.mxu0 0
    %1622 = vmatpush1.bf16.msra.mxu0 %v1574
    %1623 = vmatprep.mubr.bf16.mxu0 %v1455
    %1624 = vmatmul.mubr.bf16.gmra.mrb[0].mxu0 %v1454
    %v1625 = vpop.f32.mrb[0].mxu0
    %v1626 = vadd.f32 %v1493, %v1625
    %v1627 = vpop.f32.mrb[0].mxu0
    %v1628 = vpop.f32.mrb[0].mxu0
    %v1629 = vpop.f32.mrb[0].mxu0
    %1630 = vdwg.mxu0
    %v1631 = vmax.f32 %v1626, 0.0
    %v1632 = vpack.c.bf16 %v1631, %v1631
    %v1633 = vld [vmem:[#allocation8] sm:$0xf]
    %v1634 = vld [vmem:[#allocation8 + $0x4] sm:$0xf]
    %v1635 = vld [vmem:[#allocation8 + $0x8] sm:$0xf]
    %v1636 = vld [vmem:[#allocation8 + $0xc] sm:$0xf]
    %v1637 = vld [vmem:[#allocation8 + $0x10] sm:$0xf]
    %v1638 = vld [vmem:[#allocation8 + $0x14] sm:$0xf]
    %v1639 = vld [vmem:[#allocation8 + $0x18] sm:$0xf]
    %v1640 = vld [vmem:[#allocation8 + $0x1c] sm:$0xf]
    %v1641 = vld [vmem:[#allocation8 + $0x20] sm:$0xf]
    %v1642 = vld [vmem:[#allocation8 + $0x24] sm:$0xf]
    %v1643 = vld [vmem:[#allocation8 + $0x28] sm:$0xf]
    %v1644 = vld [vmem:[#allocation8 + $0x2c] sm:$0xf]
    %v1645 = vld [vmem:[#allocation8 + $0x30] sm:$0xf]
    %v1646 = vld [vmem:[#allocation8 + $0x34] sm:$0xf]
    %v1647 = vld [vmem:[#allocation8 + $0x38] sm:$0xf]
    %v1648 = vld [vmem:[#allocation8 + $0x3c] sm:$0xf]
    %v1649 = vld [vmem:[%s6] sm:$0x1]
    %v1651 = vlaneseq
    %v1652 = vshrl.u32 %v1651, 7
    %v1653 = vsub.s32 0, %v1652
    %v1654 = vrot.slane %v1649, %v1653
    %v1672 = vunpack.c.l.b16 %v1633
    %v1673 = vunpack.c.l.b16 %v1634
    %v1674 = vunpack.c.l.b16 %v1635
    %v1675 = vunpack.c.l.b16 %v1636
    %v1676 = vunpack.c.l.b16 %v1637
    %v1677 = vunpack.c.l.b16 %v1638
    %v1678 = vunpack.c.l.b16 %v1639
    %v1679 = vunpack.c.l.b16 %v1640
    %v1680 = vunpack.c.l.b16 %v1641
    %v1681 = vunpack.c.l.b16 %v1642
    %v1682 = vunpack.c.l.b16 %v1643
    %v1683 = vunpack.c.l.b16 %v1644
    %v1684 = vunpack.c.l.b16 %v1645
    %v1685 = vunpack.c.l.b16 %v1646
    %v1686 = vunpack.c.l.b16 %v1647
    %v1687 = vunpack.c.l.b16 %v1648
    %v1688 = vpack.c.b16 %v1673, %v1672
    %v1689 = vpack.c.b16 %v1675, %v1674
    %v1690 = vpack.c.b16 %v1677, %v1676
    %v1691 = vpack.c.b16 %v1679, %v1678
    %v1692 = vpack.c.b16 %v1681, %v1680
    %v1693 = vpack.c.b16 %v1683, %v1682
    %v1694 = vpack.c.b16 %v1685, %v1684
    %v1695 = vpack.c.b16 %v1687, %v1686
    %1704 = vmatprep.subr.bf16.mxu0 0
    %1705 = vmatpush1.bf16.msra.mxu0 %v1688
    %1706 = vmatprep.subr.bf16.mxu0 0
    %1707 = vmatpush1.bf16.msra.mxu0 %v1689
    %1708 = vmatprep.subr.bf16.mxu0 0
    %1709 = vmatpush1.bf16.msra.mxu0 %v1690
    %1710 = vmatprep.subr.bf16.mxu0 0
    %1711 = vmatpush1.bf16.msra.mxu0 %v1691
    %1712 = vmatprep.subr.bf16.mxu0 0
    %1713 = vmatpush1.bf16.msra.mxu0 %v1692
    %1714 = vmatprep.subr.bf16.mxu0 0
    %1715 = vmatpush1.bf16.msra.mxu0 %v1693
    %1716 = vmatprep.subr.bf16.mxu0 0
    %1717 = vmatpush1.bf16.msra.mxu0 %v1694
    %1718 = vmatprep.subr.bf16.mxu0 0
    %1719 = vmatpush1.bf16.msra.mxu0 %v1695
    %1720 = vmatprep.subr.bf16.mxu0 0
    %1721 = vmatpush1.bf16.msra.mxu0 0
    %1722 = vmatprep.subr.bf16.mxu0 0
    %1723 = vmatpush1.bf16.msra.mxu0 0
    %1724 = vmatprep.subr.bf16.mxu0 0
    %1725 = vmatpush1.bf16.msra.mxu0 0
    %1726 = vmatprep.subr.bf16.mxu0 0
    %1727 = vmatpush1.bf16.msra.mxu0 0
    %1728 = vmatprep.subr.bf16.mxu0 0
    %1729 = vmatpush1.bf16.msra.mxu0 0
    %1730 = vmatprep.subr.bf16.mxu0 0
    %1731 = vmatpush1.bf16.msra.mxu0 0
    %1732 = vmatprep.subr.bf16.mxu0 0
    %1733 = vmatpush1.bf16.msra.mxu0 0
    %1734 = vmatprep.subr.bf16.mxu0 0
    %1735 = vmatpush1.bf16.msra.mxu0 0
    %1736 = vmatprep.mubr.bf16.mxu0 0
    %1737 = vmatmul.mubr.bf16.gmra.mrb[0].mxu0 %v1632
    %v1738 = vpop.f32.mrb[0].mxu0
    %v1739 = vadd.f32 %v1654, %v1738
    %v1740 = vpop.f32.mrb[0].mxu0
    %v1741 = vpop.f32.mrb[0].mxu0
    %v1742 = vpop.f32.mrb[0].mxu0
    %1743 = vdwg.mxu0
    %v1744 = vpack.c.bf16 %v1739, %v1739
    %1745 = vst [vmem:[#allocation10] sm:$0xf] %v1744
    // Predicated region
    $region46: #{tpu_custom_call.1} parent=1 // pred_check
      _
    $region47: #{tpu_custom_call.1} parent=1 // pred_check_branch
      %1747 = sbr.rel (0) target = $region49
    $region48: #{tpu_custom_call.1} parent=1 // pred_region
      %s1749 = ssub.s32 64, 64
      %1750 = vsyncadd [#allocation4], %s1749
      %s1752 = sshll.u32 [#allocation10], 4
      %s1753 = int_to_ptr.vmem [resolvable:$true] %s1752
      %1755 = dma.vmem_to_hbm [thread:$0]  %s1753, 64, %s7, [#allocation4]
    $region49: #{tpu_custom_call.1} parent=1 // pred_fallthru
      _
    // Predicated region
    $region50: #{tpu_custom_call.1} parent=1 // pred_check
      _
    $region51: #{tpu_custom_call.1} parent=1 // pred_check_branch
      %1757 = sbr.rel (0) target = $region53
    $region52: #{tpu_custom_call.1} parent=1 // pred_region
      %1758 = dma.done [#allocation4], 64
    $region53: #{tpu_custom_call.1} parent=1 // pred_fallthru
      _
    %1759 = vsyncpa [#allocation3], 1
    %1760 = vsyncpa [#allocation6], 1
    %1761 = vsyncpa [#allocation9], 1
    %1762 = vsyncpa [#allocation4], 1

</llo_original>
